<compile_context>
chip_gen: v6e
topology: v6e:2x2x1
jax: 0.10.0
libtpu: 0.0.40
codegen_flags: <defaults>
</compile_context>

<pallas_src>
import functools
import math
import re

import jax
import jax.numpy as jnp
from jax.experimental import pallas as pl
from jax.experimental.pallas import tpu as pltpu


def _dyn_adj_kernel(x_ref, wq_ref, wk_ref, wv_ref, wo_ref,
                    bq_ref, bk_ref, bv_ref, bo_ref, out_ref, *,
                    num_heads, head_dim):
    block_t, B, D = x_ref.shape
    HB = num_heads * B
    f32 = jnp.float32
    cdt = wq_ref.dtype                      # MXU operand dtype (bf16 or f32)

    # ---- Q/K/V projections: three (rows, D) x (D, D) matmuls, no slicing ----
    x2 = x_ref[...].reshape(block_t * B, D).astype(cdt)
    q = jnp.dot(x2, wq_ref[...], preferred_element_type=f32) + bq_ref[...]
    k = jnp.dot(x2, wk_ref[...], preferred_element_type=f32) + bk_ref[...]
    v = jnp.dot(x2, wv_ref[...], preferred_element_type=f32) + bv_ref[...]
    q3 = q.reshape(block_t, B, D)           # 1/sqrt(head_dim) already folded in
    k3 = k.reshape(block_t, B, D)
    v3 = v.reshape(block_t, B, D)

    # ---- head-selection masks, all built once from a single set of iotas ----
    row_i = jax.lax.broadcasted_iota(jnp.int32, (HB, 1), 0)     # stacked-row idx
    col_i = jax.lax.broadcasted_iota(jnp.int32, (1, HB), 1)
    lane_i = jax.lax.broadcasted_iota(jnp.int32, (1, D), 1)     # feature lane idx
    sel = jnp.zeros((HB, D), f32)      # sel[h*B+j, d] = 1 iff lane d is in head h
    eseg = jnp.zeros((HB, HB), f32)    # block-diagonal ones: same-head key pairs
    for h in range(num_heads):
        in_rows = (row_i >= h * B) & (row_i < (h + 1) * B)
        in_cols = (col_i >= h * B) & (col_i < (h + 1) * B)
        in_lane = (lane_i >= h * head_dim) & (lane_i < (h + 1) * head_dim)
        sel = sel + (in_rows & in_lane).astype(f32)
        eseg = eseg + (in_rows & in_cols).astype(f32)

    # ---- all heads in ONE score matmul --------------------------------------
    # Stack H masked copies of K / V along the key axis: row h*B + j carries
    # only head h's lanes of key/value j, so a single einsum yields every
    # head's scores as a lane-dense (Tt, B, H*B) tensor.
    kst = jnp.concatenate([k3] * num_heads, axis=1) * sel[None]   # (Tt, HB, D)
    vst = jnp.concatenate([v3] * num_heads, axis=1) * sel[None]
    s = jnp.einsum('tid,tkd->tik', q3.astype(cdt), kst.astype(cdt),
                   preferred_element_type=f32)                    # (Tt, B, HB)

    # ---- segmented softmax, kept lane-dense ----------------------------------
    # Subtracting the global row max is a valid per-segment constant shift; the
    # per-head denominators come from one matmul with the block-diagonal ones
    # matrix (which broadcasts each head's sum back to its key positions).
    s = s - jnp.max(s, axis=-1, keepdims=True)
    p = jnp.exp(s).reshape(block_t * B, HB)
    denom = jnp.dot(p, eseg, preferred_element_type=f32)
    p = p * pl.reciprocal(jnp.maximum(denom, 1e-30), approx=True)

    # P @ V': head h's stacked value rows are nonzero only in head h's lanes,
    # so summing over all H*B rows reproduces the concatenated multi-head
    # output directly in its original lane layout.
    attn = jnp.einsum('tik,tkd->tid',
                      p.reshape(block_t, B, HB).astype(cdt), vst.astype(cdt),
                      preferred_element_type=f32)                 # (Tt, B, D)

    # ---- output projection ----------------------------------------------------
    a = jnp.dot(attn.reshape(block_t * B, D).astype(cdt), wo_ref[...],
                preferred_element_type=f32) + bo_ref[...]         # (Tt*B, D)

    # ---- cosine-similarity mean via the mean-of-normalized-rows identity -----
    # adj[t, j] = mean_i cos(a_i, a_j) = (mean_i n_i) . n_j,
    # n = a / max(||a||, 1e-8)  (per-argument clamp, like torch cosine_similarity)
    sq = jnp.sum(a * a, axis=-1, keepdims=True)
    inv_norm = pl.reciprocal(jnp.maximum(jnp.sqrt(sq), 1e-8), approx=True)
    n3 = (a * inv_norm).reshape(block_t, B, D)
    m = jnp.mean(n3, axis=1, keepdims=True)                       # (Tt, 1, D)
    prod = (n3 * m).reshape(block_t * B, D)

    # Row-wise dots emitted directly in lane-dense (1, Tt*B) layout via an M=1
    # matmul against a ones row: no sublane->lane relayout and the writeback is
    # one wide store instead of narrow masked vst's.
    ones_row = jnp.ones((1, D), f32)
    adj_row = jnp.einsum('xd,rd->xr', ones_row, prod,
                         preferred_element_type=f32)              # (1, Tt*B)
    out_ref[...] = adj_row.reshape(1, 1, block_t * B)


def _tpu_topology():
    """Returns (tensorcores_per_chip, vmem_capacity_bytes) with safe fallbacks."""
    vmem_cap = None
    try:
        vmem_cap = int(pltpu.get_tpu_info().vmem_capacity_bytes)
    except Exception:
        vmem_cap = None
    gen = 0
    try:
        match = re.search(r"v(\d+)", jax.devices()[0].device_kind.lower())
        if match:
            gen = int(match.group(1))
    except Exception:
        gen = 0
    cores = 2 if gen >= 7 else 1
    if vmem_cap is None:
        vmem_cap = (64 << 20) if gen >= 7 else (128 << 20)
    return cores, vmem_cap


def _vmem_bytes_estimate(block_t, B, D, H, weight_bytes):
    """Rough per-grid-step VMEM footprint of the kernel (bytes, with margin)."""
    rows = block_t * B
    act = rows * D * 4
    est = (2 * act                        # double-buffered input block
           + 2 * weight_bytes             # weight/bias blocks (worst case doubled)
           + 6 * act                      # q, k, v, attn, a, n3/prod (+ casts)
           + 5 * H * act                  # stacked masked K / V copies (+ casts)
           + 3 * rows * H * B * 4         # scores, probs, segment denominators
           + (H * B) * (H * B + D) * 4    # eseg / sel masks
           + 4 * rows * 4)                # output block
    return int(est * 1.25)


def _choose_block_t(T, B, D, H, weight_bytes, *, two_cores, vmem_budget,
                    max_rows=4096):
    """Largest divisor of T fitting the VMEM budget.  Single grid step on
    1-TensorCore chips; an even number (>= 2) of steps on v7x megacore."""
    divisors = [d for d in range(1, T + 1) if T % d == 0]
    feasible = [d for d in divisors
                if d * B <= max_rows
                and _vmem_bytes_estimate(d, B, D, H, weight_bytes) <= vmem_budget]
    if not feasible:
        # TODO(synk): tile over B as well when a single timestep overflows the
        # VMEM budget; for now fall back to block_t = 1.
        return 1
    if two_cores:
        even = [d for d in feasible if (T // d) >= 2 and (T // d) % 2 == 0]
        if even:
            return max(even)
        multi = [d for d in feasible if (T // d) >= 2]
        if multi:
            return max(multi)
    return max(feasible)


def _resident_spec(shape):
    """BlockSpec for constant-index (resident) weight blocks.  Large weights are
    single-buffered so the doubled copy doesn't eat v7x's 64 MiB VMEM; tiny
    weights keep the default pipeline path."""
    index_map = lambda g: (0,) * len(shape)
    if math.prod(shape) >= 512 * 512:
        try:
            return pl.BlockSpec(shape, index_map, pipeline_mode=pl.Buffered(1))
        except TypeError:
            pass
    return pl.BlockSpec(shape, index_map)


def prepare_params(in_proj_w, in_proj_b, out_w, out_b, num_heads,
                   mxu_dtype=jnp.bfloat16):
    """One-time host-side transform from nn.MultiheadAttention parameter layout.

    Returns (wq_t, wk_t, wv_t, wo_t, bq, bk, bv, bo):
      * weights pre-transposed to (D, D), stored in `mxu_dtype` (bf16 default so
        the MXU runs at its bf16 peak and resident VMEM / DMA bytes are halved),
      * the 1/sqrt(head_dim) attention scale folded into wq / bq,
      * biases kept in f32 (added after the f32-accumulated matmul).
    """
    D = out_w.shape[0]
    assert D % num_heads == 0
    head_dim = D // num_heads
    scale = 1.0 / math.sqrt(head_dim)

    wq, wk, wv = in_proj_w[:D], in_proj_w[D:2 * D], in_proj_w[2 * D:]
    bq, bk, bv = in_proj_b[:D], in_proj_b[D:2 * D], in_proj_b[2 * D:]
    wq = wq * scale      # PyTorch scales q (incl. bias) after the in-projection
    bq = bq * scale

    f32 = jnp.float32
    return (jnp.asarray(wq.T, mxu_dtype), jnp.asarray(wk.T, mxu_dtype),
            jnp.asarray(wv.T, mxu_dtype), jnp.asarray(out_w.T, mxu_dtype),
            jnp.asarray(bq, f32).reshape(1, D), jnp.asarray(bk, f32).reshape(1, D),
            jnp.asarray(bv, f32).reshape(1, D), jnp.asarray(out_b, f32).reshape(1, D))


def dynamic_adj_generator(node_embs, params, num_heads, block_t=None):
    """node_embs: (T, B, D) float32 -> adj: (T, B, 1) float32."""
    T, B, D = node_embs.shape
    assert D % num_heads == 0
    head_dim = D // num_heads
    wq_t, wk_t, wv_t, wo_t, bq, bk, bv, bo = params
    weight_bytes = sum(int(p.size) * p.dtype.itemsize for p in params)

    cores, vmem_cap = _tpu_topology()
    if block_t is None:
        block_t = _choose_block_t(T, B, D, num_heads, weight_bytes,
                                  two_cores=(cores > 1),
                                  vmem_budget=int(0.4 * vmem_cap))
    assert T % block_t == 0
    n_blocks = T // block_t

    est = _vmem_bytes_estimate(block_t, B, D, num_heads, weight_bytes)
    vmem_limit = int(min(int(0.85 * vmem_cap), max(32 << 20, 2 * est + (8 << 20))))

    kernel = functools.partial(_dyn_adj_kernel,
                               num_heads=num_heads, head_dim=head_dim)

    out = pl.pallas_call(
        kernel,
        out_shape=jax.ShapeDtypeStruct((n_blocks, 1, block_t * B), jnp.float32),
        grid_spec=pltpu.PrefetchScalarGridSpec(
            num_scalar_prefetch=0,
            grid=(n_blocks,),
            in_specs=[
                pl.BlockSpec((block_t, B, D), lambda g: (g, 0, 0)),  # node_embs
                _resident_spec((D, D)),      # Wq^T (scale folded in)
                _resident_spec((D, D)),      # Wk^T
                _resident_spec((D, D)),      # Wv^T
                _resident_spec((D, D)),      # Wo^T
                _resident_spec((1, D)),      # bq (scaled)
                _resident_spec((1, D)),      # bk
                _resident_spec((1, D)),      # bv
                _resident_spec((1, D)),      # bo
            ],
            out_specs=pl.BlockSpec((1, 1, block_t * B), lambda g: (g, 0, 0)),
        ),
        compiler_params=pltpu.CompilerParams(
            dimension_semantics=("parallel",),
            vmem_limit_bytes=vmem_limit,
        ),
    )(node_embs, wq_t, wk_t, wv_t, wo_t, bq, bk, bv, bo)

    # (T//Tt, 1, Tt*B) -> (T, B, 1): contiguous, metadata-only reshape.
    return out.reshape(T, B, 1)


def _reference_forward(node_embs, in_proj_w, in_proj_b, out_w, out_b, num_heads):
    """Pure-JAX reference of the PyTorch forward (for the sanity checks)."""
    T, B, D = node_embs.shape
    H = num_heads
    Dh = D // H
    scale = 1.0 / math.sqrt(Dh)
    outs = []
    for t in range(T):
        x = node_embs[t]                                        # (B, D)
        q = (x @ in_proj_w[:D].T + in_proj_b[:D]) * scale
        k = x @ in_proj_w[D:2 * D].T + in_proj_b[D:2 * D]
        v = x @ in_proj_w[2 * D:].T + in_proj_b[2 * D:]
        qh = q.reshape(B, H, Dh).transpose(1, 0, 2)             # (H, B, Dh)
        kh = k.reshape(B, H, Dh).transpose(1, 0, 2)
        vh = v.reshape(B, H, Dh).transpose(1, 0, 2)
        s = jnp.einsum('hid,hjd->hij', qh, kh)
        p = jax.nn.softmax(s, axis=-1)
        o = jnp.einsum('hij,hjd->hid', p, vh)
        attn = o.transpose(1, 0, 2).reshape(B, D)
        a = attn @ out_w.T + out_b
        norm = jnp.maximum(jnp.linalg.norm(a, axis=-1, keepdims=True), 1e-8)
        n = a / norm
        cos = n @ n.T                                           # (B, B)
        outs.append(cos.mean(axis=0))                           # (B,)
    return jnp.stack(outs)[..., None]                           # (T, B, 1)


if __name__ == "__main__":
    T, B, D, H = 8, 8, 32, 4

    key = jax.random.PRNGKey(0)
    k_x, k1, k2, k3 = jax.random.split(key, 4)
    node_embs = jax.random.normal(k_x, (T, B, D), jnp.float32)

    # nn.MultiheadAttention-shaped parameters.
    in_proj_w = jax.random.normal(k1, (3 * D, D), jnp.float32) * (1.0 / math.sqrt(D))
    in_proj_b = jax.random.normal(k2, (3 * D,), jnp.float32) * 0.02
    out_w = jax.random.normal(k3, (D, D), jnp.float32) * (1.0 / math.sqrt(D))
    out_b = jnp.zeros((D,), jnp.float32)

    ref = _reference_forward(node_embs, in_proj_w, in_proj_b, out_w, out_b, H)

    # f32 MXU operands: tight check (validates the head-fusion + cosine-mean
    # identity restructuring against the pure-JAX reference).
    params_f32 = prepare_params(in_proj_w, in_proj_b, out_w, out_b, H,
                                mxu_dtype=jnp.float32)
    adj_f32 = jax.block_until_ready(dynamic_adj_generator(node_embs, params_f32, H))
    assert adj_f32.shape == (T, B, 1), adj_f32.shape
    assert bool(jnp.all(jnp.isfinite(adj_f32)))
    err_f32 = float(jnp.max(jnp.abs(adj_f32 - ref)))
    assert err_f32 < 2e-2, f"f32 kernel mismatch vs reference: {err_f32}"

    # bf16 MXU operands (default; targets the bf16 MXU peak on v6e/v7x and
    # halves resident weight bytes) -> looser tolerance vs the f32 reference.
    params_bf16 = prepare_params(in_proj_w, in_proj_b, out_w, out_b, H)
    adj_bf16 = jax.block_until_ready(dynamic_adj_generator(node_embs, params_bf16, H))
    assert adj_bf16.shape == (T, B, 1), adj_bf16.shape
    assert bool(jnp.all(jnp.isfinite(adj_bf16)))
    err_bf16 = float(jnp.max(jnp.abs(adj_bf16 - ref)))
    assert err_bf16 < 5e-2, f"bf16 kernel mismatch vs reference: {err_bf16}"

    print("KERNEL_OK")
</pallas_src>

<mosaic_0001>
module attributes {stable_mosaic.version = 11 : i64} {
  func.func @_dyn_adj_kernel(%arg0: i32, %arg1: memref<8x8x32xf32, #tpu.memory_space<vmem>>, %arg2: memref<32x32xf32, #tpu.memory_space<vmem>>, %arg3: memref<32x32xf32, #tpu.memory_space<vmem>>, %arg4: memref<32x32xf32, #tpu.memory_space<vmem>>, %arg5: memref<32x32xf32, #tpu.memory_space<vmem>>, %arg6: memref<1x32xf32, #tpu.memory_space<vmem>>, %arg7: memref<1x32xf32, #tpu.memory_space<vmem>>, %arg8: memref<1x32xf32, #tpu.memory_space<vmem>>, %arg9: memref<1x32xf32, #tpu.memory_space<vmem>>, %arg10: memref<1x1x64xf32, #tpu.memory_space<vmem>>) attributes {dimension_semantics = [#tpu.dimension_semantics<parallel>], iteration_bounds = array<i64: 1>, scalar_prefetch = 0 : i64, scratch_operands = 0 : i64, tpu.core_type = #tpu.core_type<tc>, window_params = [{transform_indices = @transform_0, window_bounds = array<i64: 8, 8, 32>}, {pipeline_mode = #tpu.pipeline_mode<synchronous>, transform_indices = @transform_1, window_bounds = array<i64: 32, 32>}, {pipeline_mode = #tpu.pipeline_mode<synchronous>, transform_indices = @transform_2, window_bounds = array<i64: 32, 32>}, {pipeline_mode = #tpu.pipeline_mode<synchronous>, transform_indices = @transform_3, window_bounds = array<i64: 32, 32>}, {pipeline_mode = #tpu.pipeline_mode<synchronous>, transform_indices = @transform_4, window_bounds = array<i64: 32, 32>}, {pipeline_mode = #tpu.pipeline_mode<synchronous>, transform_indices = @transform_5, window_bounds = array<i64: 1, 32>}, {pipeline_mode = #tpu.pipeline_mode<synchronous>, transform_indices = @transform_6, window_bounds = array<i64: 1, 32>}, {pipeline_mode = #tpu.pipeline_mode<synchronous>, transform_indices = @transform_7, window_bounds = array<i64: 1, 32>}, {pipeline_mode = #tpu.pipeline_mode<synchronous>, transform_indices = @transform_8, window_bounds = array<i64: 1, 32>}, {transform_indices = @transform_9, window_bounds = array<i64: 1, 1, 64>}]} {
    %c0 = arith.constant 0 : index
    %c0_0 = arith.constant 0 : index
    %c0_1 = arith.constant 0 : index
    %0 = vector.load %arg1[%c0, %c0_0, %c0_1] : memref<8x8x32xf32, #tpu.memory_space<vmem>>, vector<8x8x32xf32>
    %1 = vector.shape_cast %0 : vector<8x8x32xf32> to vector<64x32xf32>
    %c0_2 = arith.constant 0 : index
    %c0_3 = arith.constant 0 : index
    %2 = vector.load %arg2[%c0_2, %c0_3] : memref<32x32xf32, #tpu.memory_space<vmem>>, vector<32x32xf32>
    %cst = arith.constant dense<0.000000e+00> : vector<64x32xf32>
    %3 = tpu.matmul %1, %2, %cst {dimension_numbers = #tpu.dot_dimension_numbers<[1], [0], [0], [1], [0, 0, 1, 1], [], []>} : vector<64x32xf32>, vector<32x32xf32>, vector<64x32xf32> -> vector<64x32xf32>
    %c0_4 = arith.constant 0 : index
    %c0_5 = arith.constant 0 : index
    %4 = vector.load %arg6[%c0_4, %c0_5] : memref<1x32xf32, #tpu.memory_space<vmem>>, vector<1x32xf32>
    %5 = vector.broadcast %4 : vector<1x32xf32> to vector<64x32xf32>
    %6 = arith.addf %3, %5 : vector<64x32xf32>
    %c0_6 = arith.constant 0 : index
    %c0_7 = arith.constant 0 : index
    %7 = vector.load %arg3[%c0_6, %c0_7] : memref<32x32xf32, #tpu.memory_space<vmem>>, vector<32x32xf32>
    %cst_8 = arith.constant dense<0.000000e+00> : vector<64x32xf32>
    %8 = tpu.matmul %1, %7, %cst_8 {dimension_numbers = #tpu.dot_dimension_numbers<[1], [0], [0], [1], [0, 0, 1, 1], [], []>} : vector<64x32xf32>, vector<32x32xf32>, vector<64x32xf32> -> vector<64x32xf32>
    %c0_9 = arith.constant 0 : index
    %c0_10 = arith.constant 0 : index
    %9 = vector.load %arg7[%c0_9, %c0_10] : memref<1x32xf32, #tpu.memory_space<vmem>>, vector<1x32xf32>
    %10 = vector.broadcast %9 : vector<1x32xf32> to vector<64x32xf32>
    %11 = arith.addf %8, %10 : vector<64x32xf32>
    %c0_11 = arith.constant 0 : index
    %c0_12 = arith.constant 0 : index
    %12 = vector.load %arg4[%c0_11, %c0_12] : memref<32x32xf32, #tpu.memory_space<vmem>>, vector<32x32xf32>
    %cst_13 = arith.constant dense<0.000000e+00> : vector<64x32xf32>
    %13 = tpu.matmul %1, %12, %cst_13 {dimension_numbers = #tpu.dot_dimension_numbers<[1], [0], [0], [1], [0, 0, 1, 1], [], []>} : vector<64x32xf32>, vector<32x32xf32>, vector<64x32xf32> -> vector<64x32xf32>
    %c0_14 = arith.constant 0 : index
    %c0_15 = arith.constant 0 : index
    %14 = vector.load %arg8[%c0_14, %c0_15] : memref<1x32xf32, #tpu.memory_space<vmem>>, vector<1x32xf32>
    %15 = vector.broadcast %14 : vector<1x32xf32> to vector<64x32xf32>
    %16 = arith.addf %13, %15 : vector<64x32xf32>
    %17 = vector.shape_cast %6 : vector<64x32xf32> to vector<8x8x32xf32>
    %18 = vector.shape_cast %11 : vector<64x32xf32> to vector<8x8x32xf32>
    %19 = vector.shape_cast %16 : vector<64x32xf32> to vector<8x8x32xf32>
    %20 = tpu.iota {dimensions = array<i32: 0>} : vector<32x1xi32>
    %21 = tpu.iota {dimensions = array<i32: 1>} : vector<1x32xi32>
    %22 = tpu.iota {dimensions = array<i32: 1>} : vector<1x32xi32>
    %cst_16 = arith.constant 0.000000e+00 : f32
    %23 = vector.broadcast %cst_16 : f32 to vector<32x32xf32>
    %cst_17 = arith.constant 0.000000e+00 : f32
    %24 = vector.broadcast %cst_17 : f32 to vector<32x32xf32>
    %c0_i32 = arith.constant 0 : i32
    %25 = vector.broadcast %c0_i32 : i32 to vector<32x1xi32>
    %26 = arith.cmpi sge, %20, %25 : vector<32x1xi32>
    %c8_i32 = arith.constant 8 : i32
    %27 = vector.broadcast %c8_i32 : i32 to vector<32x1xi32>
    %28 = arith.cmpi slt, %20, %27 : vector<32x1xi32>
    %29 = arith.andi %26, %28 : vector<32x1xi1>
    %c0_i32_18 = arith.constant 0 : i32
    %30 = vector.broadcast %c0_i32_18 : i32 to vector<1x32xi32>
    %31 = arith.cmpi sge, %21, %30 : vector<1x32xi32>
    %c8_i32_19 = arith.constant 8 : i32
    %32 = vector.broadcast %c8_i32_19 : i32 to vector<1x32xi32>
    %33 = arith.cmpi slt, %21, %32 : vector<1x32xi32>
    %34 = arith.andi %31, %33 : vector<1x32xi1>
    %c0_i32_20 = arith.constant 0 : i32
    %35 = vector.broadcast %c0_i32_20 : i32 to vector<1x32xi32>
    %36 = arith.cmpi sge, %22, %35 : vector<1x32xi32>
    %c8_i32_21 = arith.constant 8 : i32
    %37 = vector.broadcast %c8_i32_21 : i32 to vector<1x32xi32>
    %38 = arith.cmpi slt, %22, %37 : vector<1x32xi32>
    %39 = arith.andi %36, %38 : vector<1x32xi1>
    %40 = vector.broadcast %29 : vector<32x1xi1> to vector<32x32xi1>
    %41 = vector.broadcast %39 : vector<1x32xi1> to vector<32x32xi1>
    %42 = arith.andi %40, %41 : vector<32x32xi1>
    %43 = arith.extui %42 : vector<32x32xi1> to vector<32x32xi32>
    %44 = arith.sitofp %43 : vector<32x32xi32> to vector<32x32xf32>
    %45 = arith.addf %23, %44 : vector<32x32xf32>
    %46 = vector.broadcast %29 : vector<32x1xi1> to vector<32x32xi1>
    %47 = vector.broadcast %34 : vector<1x32xi1> to vector<32x32xi1>
    %48 = arith.andi %46, %47 : vector<32x32xi1>
    %49 = arith.extui %48 : vector<32x32xi1> to vector<32x32xi32>
    %50 = arith.sitofp %49 : vector<32x32xi32> to vector<32x32xf32>
    %51 = arith.addf %24, %50 : vector<32x32xf32>
    %c8_i32_22 = arith.constant 8 : i32
    %52 = vector.broadcast %c8_i32_22 : i32 to vector<32x1xi32>
    %53 = arith.cmpi sge, %20, %52 : vector<32x1xi32>
    %c16_i32 = arith.constant 16 : i32
    %54 = vector.broadcast %c16_i32 : i32 to vector<32x1xi32>
    %55 = arith.cmpi slt, %20, %54 : vector<32x1xi32>
    %56 = arith.andi %53, %55 : vector<32x1xi1>
    %c8_i32_23 = arith.constant 8 : i32
    %57 = vector.broadcast %c8_i32_23 : i32 to vector<1x32xi32>
    %58 = arith.cmpi sge, %21, %57 : vector<1x32xi32>
    %c16_i32_24 = arith.constant 16 : i32
    %59 = vector.broadcast %c16_i32_24 : i32 to vector<1x32xi32>
    %60 = arith.cmpi slt, %21, %59 : vector<1x32xi32>
    %61 = arith.andi %58, %60 : vector<1x32xi1>
    %c8_i32_25 = arith.constant 8 : i32
    %62 = vector.broadcast %c8_i32_25 : i32 to vector<1x32xi32>
    %63 = arith.cmpi sge, %22, %62 : vector<1x32xi32>
    %c16_i32_26 = arith.constant 16 : i32
    %64 = vector.broadcast %c16_i32_26 : i32 to vector<1x32xi32>
    %65 = arith.cmpi slt, %22, %64 : vector<1x32xi32>
    %66 = arith.andi %63, %65 : vector<1x32xi1>
    %67 = vector.broadcast %56 : vector<32x1xi1> to vector<32x32xi1>
    %68 = vector.broadcast %66 : vector<1x32xi1> to vector<32x32xi1>
    %69 = arith.andi %67, %68 : vector<32x32xi1>
    %70 = arith.extui %69 : vector<32x32xi1> to vector<32x32xi32>
    %71 = arith.sitofp %70 : vector<32x32xi32> to vector<32x32xf32>
    %72 = arith.addf %45, %71 : vector<32x32xf32>
    %73 = vector.broadcast %56 : vector<32x1xi1> to vector<32x32xi1>
    %74 = vector.broadcast %61 : vector<1x32xi1> to vector<32x32xi1>
    %75 = arith.andi %73, %74 : vector<32x32xi1>
    %76 = arith.extui %75 : vector<32x32xi1> to vector<32x32xi32>
    %77 = arith.sitofp %76 : vector<32x32xi32> to vector<32x32xf32>
    %78 = arith.addf %51, %77 : vector<32x32xf32>
    %c16_i32_27 = arith.constant 16 : i32
    %79 = vector.broadcast %c16_i32_27 : i32 to vector<32x1xi32>
    %80 = arith.cmpi sge, %20, %79 : vector<32x1xi32>
    %c24_i32 = arith.constant 24 : i32
    %81 = vector.broadcast %c24_i32 : i32 to vector<32x1xi32>
    %82 = arith.cmpi slt, %20, %81 : vector<32x1xi32>
    %83 = arith.andi %80, %82 : vector<32x1xi1>
    %c16_i32_28 = arith.constant 16 : i32
    %84 = vector.broadcast %c16_i32_28 : i32 to vector<1x32xi32>
    %85 = arith.cmpi sge, %21, %84 : vector<1x32xi32>
    %c24_i32_29 = arith.constant 24 : i32
    %86 = vector.broadcast %c24_i32_29 : i32 to vector<1x32xi32>
    %87 = arith.cmpi slt, %21, %86 : vector<1x32xi32>
    %88 = arith.andi %85, %87 : vector<1x32xi1>
    %c16_i32_30 = arith.constant 16 : i32
    %89 = vector.broadcast %c16_i32_30 : i32 to vector<1x32xi32>
    %90 = arith.cmpi sge, %22, %89 : vector<1x32xi32>
    %c24_i32_31 = arith.constant 24 : i32
    %91 = vector.broadcast %c24_i32_31 : i32 to vector<1x32xi32>
    %92 = arith.cmpi slt, %22, %91 : vector<1x32xi32>
    %93 = arith.andi %90, %92 : vector<1x32xi1>
    %94 = vector.broadcast %83 : vector<32x1xi1> to vector<32x32xi1>
    %95 = vector.broadcast %93 : vector<1x32xi1> to vector<32x32xi1>
    %96 = arith.andi %94, %95 : vector<32x32xi1>
    %97 = arith.extui %96 : vector<32x32xi1> to vector<32x32xi32>
    %98 = arith.sitofp %97 : vector<32x32xi32> to vector<32x32xf32>
    %99 = arith.addf %72, %98 : vector<32x32xf32>
    %100 = vector.broadcast %83 : vector<32x1xi1> to vector<32x32xi1>
    %101 = vector.broadcast %88 : vector<1x32xi1> to vector<32x32xi1>
    %102 = arith.andi %100, %101 : vector<32x32xi1>
    %103 = arith.extui %102 : vector<32x32xi1> to vector<32x32xi32>
    %104 = arith.sitofp %103 : vector<32x32xi32> to vector<32x32xf32>
    %105 = arith.addf %78, %104 : vector<32x32xf32>
    %c24_i32_32 = arith.constant 24 : i32
    %106 = vector.broadcast %c24_i32_32 : i32 to vector<32x1xi32>
    %107 = arith.cmpi sge, %20, %106 : vector<32x1xi32>
    %c32_i32 = arith.constant 32 : i32
    %108 = vector.broadcast %c32_i32 : i32 to vector<32x1xi32>
    %109 = arith.cmpi slt, %20, %108 : vector<32x1xi32>
    %110 = arith.andi %107, %109 : vector<32x1xi1>
    %c24_i32_33 = arith.constant 24 : i32
    %111 = vector.broadcast %c24_i32_33 : i32 to vector<1x32xi32>
    %112 = arith.cmpi sge, %21, %111 : vector<1x32xi32>
    %c32_i32_34 = arith.constant 32 : i32
    %113 = vector.broadcast %c32_i32_34 : i32 to vector<1x32xi32>
    %114 = arith.cmpi slt, %21, %113 : vector<1x32xi32>
    %115 = arith.andi %112, %114 : vector<1x32xi1>
    %c24_i32_35 = arith.constant 24 : i32
    %116 = vector.broadcast %c24_i32_35 : i32 to vector<1x32xi32>
    %117 = arith.cmpi sge, %22, %116 : vector<1x32xi32>
    %c32_i32_36 = arith.constant 32 : i32
    %118 = vector.broadcast %c32_i32_36 : i32 to vector<1x32xi32>
    %119 = arith.cmpi slt, %22, %118 : vector<1x32xi32>
    %120 = arith.andi %117, %119 : vector<1x32xi1>
    %121 = vector.broadcast %110 : vector<32x1xi1> to vector<32x32xi1>
    %122 = vector.broadcast %120 : vector<1x32xi1> to vector<32x32xi1>
    %123 = arith.andi %121, %122 : vector<32x32xi1>
    %124 = arith.extui %123 : vector<32x32xi1> to vector<32x32xi32>
    %125 = arith.sitofp %124 : vector<32x32xi32> to vector<32x32xf32>
    %126 = arith.addf %99, %125 : vector<32x32xf32>
    %127 = vector.broadcast %110 : vector<32x1xi1> to vector<32x32xi1>
    %128 = vector.broadcast %115 : vector<1x32xi1> to vector<32x32xi1>
    %129 = arith.andi %127, %128 : vector<32x32xi1>
    %130 = arith.extui %129 : vector<32x32xi1> to vector<32x32xi32>
    %131 = arith.sitofp %130 : vector<32x32xi32> to vector<32x32xf32>
    %132 = arith.addf %105, %131 : vector<32x32xf32>
    %133 = tpu.concatenate %18, %18, %18, %18 in 1 : vector<8x8x32xf32>, vector<8x8x32xf32>, vector<8x8x32xf32>, vector<8x8x32xf32> -> vector<8x32x32xf32>
    %134 = vector.shape_cast %126 : vector<32x32xf32> to vector<1x32x32xf32>
    %135 = vector.broadcast %134 : vector<1x32x32xf32> to vector<8x32x32xf32>
    %136 = arith.mulf %133, %135 : vector<8x32x32xf32>
    %137 = tpu.concatenate %19, %19, %19, %19 in 1 : vector<8x8x32xf32>, vector<8x8x32xf32>, vector<8x8x32xf32>, vector<8x8x32xf32> -> vector<8x32x32xf32>
    %138 = vector.shape_cast %126 : vector<32x32xf32> to vector<1x32x32xf32>
    %139 = vector.broadcast %138 : vector<1x32x32xf32> to vector<8x32x32xf32>
    %140 = arith.mulf %137, %139 : vector<8x32x32xf32>
    "tpu.trace_start"() <{level = 10 : i32, message = "tid,tkd->tik"}> : () -> ()
    %cst_37 = arith.constant dense<0.000000e+00> : vector<8x8x32xf32>
    %141 = tpu.matmul %17, %136, %cst_37 {dimension_numbers = #tpu.dot_dimension_numbers<[2], [2], [1], [1], [0, 0, 0, 1, 1, 1], [0], [0]>} : vector<8x8x32xf32>, vector<8x32x32xf32>, vector<8x8x32xf32> -> vector<8x8x32xf32>
    "tpu.trace_stop"() : () -> ()
    %cst_38 = arith.constant dense<0xFF800000> : vector<8x8xf32>
    %142 = vector.multi_reduction <maximumf>, %141, %cst_38 [2] : vector<8x8x32xf32> to vector<8x8xf32>
    %143 = vector.shape_cast %142 : vector<8x8xf32> to vector<8x8x1xf32>
    %144 = vector.broadcast %143 : vector<8x8x1xf32> to vector<8x8x32xf32>
    %145 = arith.subf %141, %144 : vector<8x8x32xf32>
    %146 = math.exp %145 : vector<8x8x32xf32>
    %147 = vector.shape_cast %146 : vector<8x8x32xf32> to vector<64x32xf32>
    %cst_39 = arith.constant dense<0.000000e+00> : vector<64x32xf32>
    %148 = tpu.matmul %147, %132, %cst_39 {dimension_numbers = #tpu.dot_dimension_numbers<[1], [0], [0], [1], [0, 0, 1, 1], [], []>} : vector<64x32xf32>, vector<32x32xf32>, vector<64x32xf32> -> vector<64x32xf32>
    %cst_40 = arith.constant 1.000000e-30 : f32
    %149 = vector.broadcast %cst_40 : f32 to vector<64x32xf32>
    %150 = arith.maximumf %148, %149 : vector<64x32xf32>
    %151 = tpu.reciprocal %150 {approx = true} : vector<64x32xf32> -> vector<64x32xf32>
    %152 = arith.mulf %147, %151 : vector<64x32xf32>
    %153 = vector.shape_cast %152 : vector<64x32xf32> to vector<8x8x32xf32>
    "tpu.trace_start"() <{level = 10 : i32, message = "tik,tkd->tid"}> : () -> ()
    %cst_41 = arith.constant dense<0.000000e+00> : vector<8x8x32xf32>
    %154 = tpu.matmul %153, %140, %cst_41 {dimension_numbers = #tpu.dot_dimension_numbers<[2], [1], [1], [2], [0, 0, 0, 1, 1, 2], [0], [0]>} : vector<8x8x32xf32>, vector<8x32x32xf32>, vector<8x8x32xf32> -> vector<8x8x32xf32>
    "tpu.trace_stop"() : () -> ()
    %155 = vector.shape_cast %154 : vector<8x8x32xf32> to vector<64x32xf32>
    %c0_42 = arith.constant 0 : index
    %c0_43 = arith.constant 0 : index
    %156 = vector.load %arg5[%c0_42, %c0_43] : memref<32x32xf32, #tpu.memory_space<vmem>>, vector<32x32xf32>
    %cst_44 = arith.constant dense<0.000000e+00> : vector<64x32xf32>
    %157 = tpu.matmul %155, %156, %cst_44 {dimension_numbers = #tpu.dot_dimension_numbers<[1], [0], [0], [1], [0, 0, 1, 1], [], []>} : vector<64x32xf32>, vector<32x32xf32>, vector<64x32xf32> -> vector<64x32xf32>
    %c0_45 = arith.constant 0 : index
    %c0_46 = arith.constant 0 : index
    %158 = vector.load %arg9[%c0_45, %c0_46] : memref<1x32xf32, #tpu.memory_space<vmem>>, vector<1x32xf32>
    %159 = vector.broadcast %158 : vector<1x32xf32> to vector<64x32xf32>
    %160 = arith.addf %157, %159 : vector<64x32xf32>
    %161 = arith.mulf %160, %160 : vector<64x32xf32>
    %cst_47 = arith.constant dense<0.000000e+00> : vector<64xf32>
    %162 = vector.multi_reduction <add>, %161, %cst_47 [1] : vector<64x32xf32> to vector<64xf32>
    %163 = vector.shape_cast %162 : vector<64xf32> to vector<64x1xf32>
    %164 = math.sqrt %163 : vector<64x1xf32>
    %cst_48 = arith.constant 9.99999993E-9 : f32
    %165 = vector.broadcast %cst_48 : f32 to vector<64x1xf32>
    %166 = arith.maximumf %164, %165 : vector<64x1xf32>
    %167 = tpu.reciprocal %166 {approx = true} : vector<64x1xf32> -> vector<64x1xf32>
    %168 = vector.broadcast %167 : vector<64x1xf32> to vector<64x32xf32>
    %169 = arith.mulf %160, %168 : vector<64x32xf32>
    %170 = vector.shape_cast %169 : vector<64x32xf32> to vector<8x8x32xf32>
    %cst_49 = arith.constant dense<0.000000e+00> : vector<8x32xf32>
    %171 = vector.multi_reduction <add>, %170, %cst_49 [1] : vector<8x8x32xf32> to vector<8x32xf32>
    %172 = vector.shape_cast %171 : vector<8x32xf32> to vector<8x1x32xf32>
    %cst_50 = arith.constant 8.000000e+00 : f32
    %173 = vector.broadcast %cst_50 : f32 to vector<8x1x32xf32>
    %174 = arith.divf %172, %173 : vector<8x1x32xf32>
    %175 = vector.broadcast %174 : vector<8x1x32xf32> to vector<8x8x32xf32>
    %176 = arith.mulf %170, %175 : vector<8x8x32xf32>
    %177 = vector.shape_cast %176 : vector<8x8x32xf32> to vector<64x32xf32>
    %cst_51 = arith.constant 1.000000e+00 : f32
    %178 = vector.broadcast %cst_51 : f32 to vector<1x32xf32>
    "tpu.trace_start"() <{level = 10 : i32, message = "xd,rd->xr"}> : () -> ()
    %cst_52 = arith.constant dense<0.000000e+00> : vector<1x64xf32>
    %179 = tpu.matmul %178, %177, %cst_52 {dimension_numbers = #tpu.dot_dimension_numbers<[1], [1], [0], [0], [0, 0, 1, 0], [], []>} : vector<1x32xf32>, vector<64x32xf32>, vector<1x64xf32> -> vector<1x64xf32>
    "tpu.trace_stop"() : () -> ()
    %180 = vector.shape_cast %179 : vector<1x64xf32> to vector<1x1x64xf32>
    %c0_53 = arith.constant 0 : index
    %c0_54 = arith.constant 0 : index
    %c0_55 = arith.constant 0 : index
    %181 = vector.load %arg10[%c0_53, %c0_54, %c0_55] : memref<1x1x64xf32, #tpu.memory_space<vmem>>, vector<1x1x64xf32>
    tpu.vector_store %arg10[%c0_53, %c0_54, %c0_55], %180 {strides = array<i32>} : memref<1x1x64xf32, #tpu.memory_space<vmem>>, vector<1x1x64xf32>,
    return
  }
  func.func @transform_0(%arg0: i32) -> (i32, i32, i32) {
    %c0_i32 = arith.constant 0 : i32
    %c0_i32_0 = arith.constant 0 : i32
    %c0_i32_1 = arith.constant 0 : i32
    return %arg0, %c0_i32, %c0_i32_0 : i32, i32, i32
  }
  func.func @transform_1(%arg0: i32) -> (i32, i32) {
    %c0_i32 = arith.constant 0 : i32
    %c0_i32_0 = arith.constant 0 : i32
    %c0_i32_1 = arith.constant 0 : i32
    return %c0_i32, %c0_i32_0 : i32, i32
  }
  func.func @transform_2(%arg0: i32) -> (i32, i32) {
    %c0_i32 = arith.constant 0 : i32
    %c0_i32_0 = arith.constant 0 : i32
    %c0_i32_1 = arith.constant 0 : i32
    return %c0_i32, %c0_i32_0 : i32, i32
  }
  func.func @transform_3(%arg0: i32) -> (i32, i32) {
    %c0_i32 = arith.constant 0 : i32
    %c0_i32_0 = arith.constant 0 : i32
    %c0_i32_1 = arith.constant 0 : i32
    return %c0_i32, %c0_i32_0 : i32, i32
  }
  func.func @transform_4(%arg0: i32) -> (i32, i32) {
    %c0_i32 = arith.constant 0 : i32
    %c0_i32_0 = arith.constant 0 : i32
    %c0_i32_1 = arith.constant 0 : i32
    return %c0_i32, %c0_i32_0 : i32, i32
  }
  func.func @transform_5(%arg0: i32) -> (i32, i32) {
    %c0_i32 = arith.constant 0 : i32
    %c0_i32_0 = arith.constant 0 : i32
    %c0_i32_1 = arith.constant 0 : i32
    return %c0_i32, %c0_i32_0 : i32, i32
  }
  func.func @transform_6(%arg0: i32) -> (i32, i32) {
    %c0_i32 = arith.constant 0 : i32
    %c0_i32_0 = arith.constant 0 : i32
    %c0_i32_1 = arith.constant 0 : i32
    return %c0_i32, %c0_i32_0 : i32, i32
  }
  func.func @transform_7(%arg0: i32) -> (i32, i32) {
    %c0_i32 = arith.constant 0 : i32
    %c0_i32_0 = arith.constant 0 : i32
    %c0_i32_1 = arith.constant 0 : i32
    return %c0_i32, %c0_i32_0 : i32, i32
  }
  func.func @transform_8(%arg0: i32) -> (i32, i32) {
    %c0_i32 = arith.constant 0 : i32
    %c0_i32_0 = arith.constant 0 : i32
    %c0_i32_1 = arith.constant 0 : i32
    return %c0_i32, %c0_i32_0 : i32, i32
  }
  func.func @transform_9(%arg0: i32) -> (i32, i32, i32) {
    %c0_i32 = arith.constant 0 : i32
    %c0_i32_0 = arith.constant 0 : i32
    %c0_i32_1 = arith.constant 0 : i32
    return %arg0, %c0_i32, %c0_i32_0 : i32, i32, i32
  }
}

</mosaic_0001>

<llo_original>
// kernel: tpu_custom_call.1
$region0: #{tpu_custom_call.1}
  #allocation0 [shape = 'u32[]', space=smem, size = 0x4, offset = 0x4, fixed_abs, tag = 'smem constant byte address 0x4 - core index']
  #allocation1 [shape = 'u32[144,128]{1,0:T(1,128)}', space=vmem, size = 0x12000, scoped, tag = 'internal scratch']
  %s0 = inlined_call_operand.hbm [shape: f32[8,8,32], index: 0, kind: input, shape index: {}]
  %s1 = inlined_call_operand.hbm [shape: f32[32,32], index: 1, kind: input, shape index: {}]
  %s2 = inlined_call_operand.hbm [shape: f32[32,32], index: 2, kind: input, shape index: {}]
  %s3 = inlined_call_operand.hbm [shape: f32[32,32], index: 3, kind: input, shape index: {}]
  %s4 = inlined_call_operand.hbm [shape: f32[32,32], index: 4, kind: input, shape index: {}]
  %s5 = inlined_call_operand.vmem [shape: f32[1,32], index: 5, kind: input, shape index: {}]
  %s6 = inlined_call_operand.vmem [shape: f32[1,32], index: 6, kind: input, shape index: {}]
  %s7 = inlined_call_operand.vmem [shape: f32[1,32], index: 7, kind: input, shape index: {}]
  %s8 = inlined_call_operand.vmem [shape: f32[1,32], index: 8, kind: input, shape index: {}]
  %s9 = inlined_call_operand.hbm [shape: f32[1,1,64], index: 9, kind: output, shape index: {}]
  %s10 = sld [smem:[#allocation0]]
  $region66: #{tpu_custom_call.1} parent=0
    _
  %s12 = ssub.s32 1, %s10
  %s13 = scalar_select 0, %s12, %s10
  $region1: #{tpu_custom_call.1} parent=0
    #allocation2 [shape = 'u8[32768]{0}', space=vmem, size = 0x8000, scoped, tag = 'input window, operand 0, single buffered']
    #allocation3 [shape = 's32[1]{0}', space=sflag, size = 0x4, scoped, tag = 'scoped memory for tpu_custom_call.1']
    #allocation4 [shape = 's32[1]{0}', space=sflag, size = 0x4, scoped, tag = 'scoped memory for tpu_custom_call.1']
    #allocation5 [shape = 'u8[16384]{0}', space=vmem, size = 0x4000, scoped, tag = 'input window, operand 1, single buffered']
    #allocation6 [shape = 's32[1]{0}', space=sflag, size = 0x4, scoped, tag = 'scoped memory for tpu_custom_call.1']
    #allocation7 [shape = 'u8[16384]{0}', space=vmem, size = 0x4000, scoped, tag = 'input window, operand 2, single buffered']
    #allocation8 [shape = 'u8[16384]{0}', space=vmem, size = 0x4000, scoped, tag = 'input window, operand 3, single buffered']
    #allocation9 [shape = 's32[1]{0}', space=sflag, size = 0x4, scoped, tag = 'scoped memory for tpu_custom_call.1']
    #allocation10 [shape = 'u8[16384]{0}', space=vmem, size = 0x4000, scoped, tag = 'input window, operand 4, single buffered']
    #allocation11 [shape = 'u8[512]{0}', space=vmem, size = 0x400, scoped, tag = 'output window, operand 0, single buffered']
    %14 = vsyncpa [#allocation3], 0
    %15 = vsyncpa [#allocation6], 0
    %16 = vsyncpa [#allocation9], 0
    %17 = vsyncpa [#allocation4], 0
    // Predicated region
    $region2: #{tpu_custom_call.1} parent=1 // pred_check
      _
    $region3: #{tpu_custom_call.1} parent=1 // pred_check_branch
      %19 = sbr.rel (0) target = $region5
    $region4: #{tpu_custom_call.1} parent=1 // pred_region
      %s21 = ssub.s32 1024, 1024
      %22 = vsyncadd [#allocation3], %s21
      %s23 = sshll.u32 [#allocation2], 4
      %s24 = int_to_ptr.vmem [resolvable:$true] %s23
      %29 = dma.hbm_to_vmem [thread:$0]  %s0, 1024, %s24, [#allocation3], 128, 128, 8
    $region5: #{tpu_custom_call.1} parent=1 // pred_fallthru
      _
    // Predicated region
    $region6: #{tpu_custom_call.1} parent=1 // pred_check
      _
    $region7: #{tpu_custom_call.1} parent=1 // pred_check_branch
      %31 = sbr.rel (0) target = $region9
    $region8: #{tpu_custom_call.1} parent=1 // pred_region
      %s33 = ssub.s32 512, 512
      %34 = vsyncadd [#allocation6], %s33
      %s35 = sshll.u32 [#allocation5], 4
      %s36 = int_to_ptr.vmem [resolvable:$true] %s35
      %41 = dma.hbm_to_vmem [thread:$0]  %s1, 512, %s36, [#allocation6], 128, 128, 8
    $region9: #{tpu_custom_call.1} parent=1 // pred_fallthru
      _
    // Predicated region
    $region10: #{tpu_custom_call.1} parent=1 // pred_check
      _
    $region11: #{tpu_custom_call.1} parent=1 // pred_check_branch
      %43 = sbr.rel (0) target = $region13
    $region12: #{tpu_custom_call.1} parent=1 // pred_region
      %s45 = ssub.s32 512, 512
      %46 = vsyncadd [#allocation6], %s45
      %s47 = sshll.u32 [#allocation7], 4
      %s48 = int_to_ptr.vmem [resolvable:$true] %s47
      %53 = dma.hbm_to_vmem [thread:$0]  %s2, 512, %s48, [#allocation6], 128, 128, 8
    $region13: #{tpu_custom_call.1} parent=1 // pred_fallthru
      _
    // Predicated region
    $region14: #{tpu_custom_call.1} parent=1 // pred_check
      _
    $region15: #{tpu_custom_call.1} parent=1 // pred_check_branch
      %55 = sbr.rel (0) target = $region17
    $region16: #{tpu_custom_call.1} parent=1 // pred_region
      %s57 = ssub.s32 512, 512
      %58 = vsyncadd [#allocation9], %s57
      %s59 = sshll.u32 [#allocation8], 4
      %s60 = int_to_ptr.vmem [resolvable:$true] %s59
      %65 = dma.hbm_to_vmem [thread:$0]  %s3, 512, %s60, [#allocation9], 128, 128, 8
    $region17: #{tpu_custom_call.1} parent=1 // pred_fallthru
      _
    // Predicated region
    $region18: #{tpu_custom_call.1} parent=1 // pred_check
      _
    $region19: #{tpu_custom_call.1} parent=1 // pred_check_branch
      %67 = sbr.rel (0) target = $region21
    $region20: #{tpu_custom_call.1} parent=1 // pred_region
      %s69 = ssub.s32 512, 512
      %70 = vsyncadd [#allocation9], %s69
      %s71 = sshll.u32 [#allocation10], 4
      %s72 = int_to_ptr.vmem [resolvable:$true] %s71
      %77 = dma.hbm_to_vmem [thread:$0]  %s4, 512, %s72, [#allocation9], 128, 128, 8
    $region21: #{tpu_custom_call.1} parent=1 // pred_fallthru
      _
    // Predicated region
    $region22: #{tpu_custom_call.1} parent=1 // pred_check
      _
    $region23: #{tpu_custom_call.1} parent=1 // pred_check_branch
      %79 = sbr.rel (0) target = $region25
    $region24: #{tpu_custom_call.1} parent=1 // pred_region
      _
    $region25: #{tpu_custom_call.1} parent=1 // pred_fallthru
      _
    // Predicated region
    $region26: #{tpu_custom_call.1} parent=1 // pred_check
      _
    $region27: #{tpu_custom_call.1} parent=1 // pred_check_branch
      %81 = sbr.rel (0) target = $region29
    $region28: #{tpu_custom_call.1} parent=1 // pred_region
      _
    $region29: #{tpu_custom_call.1} parent=1 // pred_fallthru
      _
    // Predicated region
    $region30: #{tpu_custom_call.1} parent=1 // pred_check
      _
    $region31: #{tpu_custom_call.1} parent=1 // pred_check_branch
      %83 = sbr.rel (0) target = $region33
    $region32: #{tpu_custom_call.1} parent=1 // pred_region
      _
    $region33: #{tpu_custom_call.1} parent=1 // pred_fallthru
      _
    // Predicated region
    $region34: #{tpu_custom_call.1} parent=1 // pred_check
      _
    $region35: #{tpu_custom_call.1} parent=1 // pred_check_branch
      %85 = sbr.rel (0) target = $region37
    $region36: #{tpu_custom_call.1} parent=1 // pred_region
      _
    $region37: #{tpu_custom_call.1} parent=1 // pred_fallthru
      _
    // Predicated region
    $region38: #{tpu_custom_call.1} parent=1 // pred_check
      _
    $region39: #{tpu_custom_call.1} parent=1 // pred_check_branch
      %87 = sbr.rel (0) target = $region41
    $region40: #{tpu_custom_call.1} parent=1 // pred_region
      %88 = dma.done [#allocation3], 1024
    $region41: #{tpu_custom_call.1} parent=1 // pred_fallthru
      _
    // Predicated region
    $region42: #{tpu_custom_call.1} parent=1 // pred_check
      _
    $region43: #{tpu_custom_call.1} parent=1 // pred_check_branch
      %90 = sbr.rel (0) target = $region45
    $region44: #{tpu_custom_call.1} parent=1 // pred_region
      %91 = dma.done [#allocation6], 512
    $region45: #{tpu_custom_call.1} parent=1 // pred_fallthru
      _
    // Predicated region
    $region46: #{tpu_custom_call.1} parent=1 // pred_check
      _
    $region47: #{tpu_custom_call.1} parent=1 // pred_check_branch
      %93 = sbr.rel (0) target = $region49
    $region48: #{tpu_custom_call.1} parent=1 // pred_region
      %94 = dma.done [#allocation6], 512
    $region49: #{tpu_custom_call.1} parent=1 // pred_fallthru
      _
    // Predicated region
    $region50: #{tpu_custom_call.1} parent=1 // pred_check
      _
    $region51: #{tpu_custom_call.1} parent=1 // pred_check_branch
      %96 = sbr.rel (0) target = $region53
    $region52: #{tpu_custom_call.1} parent=1 // pred_region
      %97 = dma.done [#allocation9], 512
    $region53: #{tpu_custom_call.1} parent=1 // pred_fallthru
      _
    // Predicated region
    $region54: #{tpu_custom_call.1} parent=1 // pred_check
      _
    $region55: #{tpu_custom_call.1} parent=1 // pred_check_branch
      %99 = sbr.rel (0) target = $region57
    $region56: #{tpu_custom_call.1} parent=1 // pred_region
      %100 = dma.done [#allocation9], 512
    $region57: #{tpu_custom_call.1} parent=1 // pred_fallthru
      _
    %v101 = vld [vmem:[#allocation2] sm:$0xff]
    %v102 = vld [vmem:[#allocation2 + $0x8] sm:$0xff]
    %v103 = vld [vmem:[#allocation2 + $0x10] sm:$0xff]
    %v104 = vld [vmem:[#allocation2 + $0x18] sm:$0xff]
    %v105 = vld [vmem:[#allocation2 + $0x20] sm:$0xff]
    %v106 = vld [vmem:[#allocation2 + $0x28] sm:$0xff]
    %v107 = vld [vmem:[#allocation2 + $0x30] sm:$0xff]
    %v108 = vld [vmem:[#allocation2 + $0x38] sm:$0xff]
    %v109 = vld [vmem:[#allocation5] sm:$0xff]
    %v110 = vld [vmem:[#allocation5 + $0x8] sm:$0xff]
    %v111 = vld [vmem:[#allocation5 + $0x10] sm:$0xff]
    %v112 = vld [vmem:[#allocation5 + $0x18] sm:$0xff]
    %v113 = vld [vmem:[%s5] sm:$0x1]
    %v115 = vlaneseq
    %v116 = vshrl.u32 %v115, 7
    %v117 = vsub.s32 0, %v116
    %v118 = vrot.slane %v113, %v117
    %vm120 = vcmask 261120
    %v122 = vsel %vm120, %v101, 0
    %v125 = vsel %vm120, %v102, 0
    %v128 = vsel %vm120, %v103, 0
    %v131 = vsel %vm120, %v104, 0
    %v134 = vsel %vm120, %v105, 0
    %v137 = vsel %vm120, %v106, 0
    %v140 = vsel %vm120, %v107, 0
    %v143 = vsel %vm120, %v108, 0
    %145 = vmatprep.subr.mxu0 0.0
    %146 = vmatpush1.msra.mxu0 0.0
    %147 = vmatprep.subr.mxu0 0.0
    %148 = vmatpush1.msra.mxu0 0.0
    %149 = vmatprep.subr.mxu0 0.0
    %150 = vmatpush1.msra.mxu0 0.0
    %151 = vmatprep.subr.mxu0 0.0
    %152 = vmatpush1.msra.mxu0 0.0
    %153 = vmatprep.subr.mxu0 0.0
    %154 = vmatpush1.msra.mxu0 0.0
    %155 = vmatprep.subr.mxu0 0.0
    %156 = vmatpush1.msra.mxu0 0.0
    %157 = vmatprep.subr.mxu0 0.0
    %158 = vmatpush1.msra.mxu0 0.0
    %159 = vmatprep.subr.mxu0 0.0
    %160 = vmatpush1.msra.mxu0 0.0
    %161 = vmatprep.subr.mxu0 0.0
    %162 = vmatpush1.msra.mxu0 0.0
    %163 = vmatprep.subr.mxu0 0.0
    %164 = vmatpush1.msra.mxu0 0.0
    %165 = vmatprep.subr.mxu0 0.0
    %166 = vmatpush1.msra.mxu0 0.0
    %167 = vmatprep.subr.mxu0 0.0
    %168 = vmatpush1.msra.mxu0 0.0
    %169 = vmatprep.subr.mxu0 0.0
    %170 = vmatpush1.msra.mxu0 %v112
    %171 = vmatprep.subr.mxu0 0.0
    %172 = vmatpush1.msra.mxu0 %v111
    %173 = vmatprep.subr.mxu0 0.0
    %174 = vmatpush1.msra.mxu0 %v110
    %175 = vmatprep.subr.mxu0 0.0
    %176 = vmatpush1.msra.mxu0 %v109
    %177 = vmatprep.subr.mxu0 0.0
    %178 = vmatpush2.msra.mxu0 0.0
    %179 = vmatprep.subr.mxu0 0.0
    %180 = vmatpush2.msra.mxu0 0.0
    %181 = vmatprep.subr.mxu0 0.0
    %182 = vmatpush2.msra.mxu0 0.0
    %183 = vmatprep.subr.mxu0 0.0
    %184 = vmatpush2.msra.mxu0 0.0
    %185 = vmatprep.subr.mxu0 0.0
    %186 = vmatpush2.msra.mxu0 0.0
    %187 = vmatprep.subr.mxu0 0.0
    %188 = vmatpush2.msra.mxu0 0.0
    %189 = vmatprep.subr.mxu0 0.0
    %190 = vmatpush2.msra.mxu0 0.0
    %191 = vmatprep.subr.mxu0 0.0
    %192 = vmatpush2.msra.mxu0 0.0
    %193 = vmatprep.subr.mxu0 0.0
    %194 = vmatpush2.msra.mxu0 0.0
    %195 = vmatprep.subr.mxu0 0.0
    %196 = vmatpush2.msra.mxu0 0.0
    %197 = vmatprep.subr.mxu0 0.0
    %198 = vmatpush2.msra.mxu0 0.0
    %199 = vmatprep.subr.mxu0 0.0
    %200 = vmatpush2.msra.mxu0 0.0
    %201 = vmatprep.subr.mxu0 0.0
    %202 = vmatpush2.msra.mxu0 0.0
    %203 = vmatprep.subr.mxu0 0.0
    %204 = vmatpush2.msra.mxu0 0.0
    %205 = vmatprep.subr.mxu0 0.0
    %206 = vmatpush2.msra.mxu0 0.0
    %207 = vmatprep.subr.mxu0 0.0
    %208 = vmatpush2.msra.mxu0 0.0
    %209 = vmatprep.mubr.f32.mxu0 0.0
    %210 = vmatmul.mubr.f32.gmra.mxu0 %v122
    %v211 = vpop.f32.mrf.mxu0
    %v212 = vadd.f32 %v118, %v211
    %v213 = vpop.f32.mrf.mxu0
    %214 = vmatprep.mubr.f32.mxu0 0.0
    %215 = vmatmul.mubr.f32.gmra.mxu0 %v125
    %v216 = vpop.f32.mrf.mxu0
    %v217 = vadd.f32 %v118, %v216
    %v218 = vpop.f32.mrf.mxu0
    %219 = vmatprep.mubr.f32.mxu0 0.0
    %220 = vmatmul.mubr.f32.gmra.mxu0 %v128
    %v221 = vpop.f32.mrf.mxu0
    %v222 = vadd.f32 %v118, %v221
    %v223 = vpop.f32.mrf.mxu0
    %224 = vmatprep.mubr.f32.mxu0 0.0
    %225 = vmatmul.mubr.f32.gmra.mxu0 %v131
    %v226 = vpop.f32.mrf.mxu0
    %v227 = vadd.f32 %v118, %v226
    %v228 = vpop.f32.mrf.mxu0
    %229 = vmatprep.mubr.f32.mxu0 0.0
    %230 = vmatmul.mubr.f32.gmra.mxu0 %v134
    %v231 = vpop.f32.mrf.mxu0
    %v232 = vadd.f32 %v118, %v231
    %v233 = vpop.f32.mrf.mxu0
    %234 = vmatprep.mubr.f32.mxu0 0.0
    %235 = vmatmul.mubr.f32.gmra.mxu0 %v137
    %v236 = vpop.f32.mrf.mxu0
    %v237 = vadd.f32 %v118, %v236
    %v238 = vpop.f32.mrf.mxu0
    %239 = vmatprep.mubr.f32.mxu0 0.0
    %240 = vmatmul.mubr.f32.gmra.mxu0 %v140
    %v241 = vpop.f32.mrf.mxu0
    %v242 = vadd.f32 %v118, %v241
    %v243 = vpop.f32.mrf.mxu0
    %244 = vmatprep.mubr.f32.mxu0 0.0
    %245 = vmatmul.mubr.f32.gmra.mxu0 %v143
    %v246 = vpop.f32.mrf.mxu0
    %v247 = vadd.f32 %v118, %v246
    %v248 = vpop.f32.mrf.mxu0
    %249 = vdwg.mxu0
    %v250 = vld [vmem:[#allocation7] sm:$0xff]
    %v251 = vld [vmem:[#allocation7 + $0x8] sm:$0xff]
    %v252 = vld [vmem:[#allocation7 + $0x10] sm:$0xff]
    %v253 = vld [vmem:[#allocation7 + $0x18] sm:$0xff]
    %v254 = vld [vmem:[%s6] sm:$0x1]
    %v256 = vlaneseq
    %v257 = vshrl.u32 %v256, 7
    %v258 = vsub.s32 0, %v257
    %v259 = vrot.slane %v254, %v258
    %261 = vmatprep.subr.mxu0 0.0
    %262 = vmatpush1.msra.mxu0 0.0
    %263 = vmatprep.subr.mxu0 0.0
    %264 = vmatpush1.msra.mxu0 0.0
    %265 = vmatprep.subr.mxu0 0.0
    %266 = vmatpush1.msra.mxu0 0.0
    %267 = vmatprep.subr.mxu0 0.0
    %268 = vmatpush1.msra.mxu0 0.0
    %269 = vmatprep.subr.mxu0 0.0
    %270 = vmatpush1.msra.mxu0 0.0
    %271 = vmatprep.subr.mxu0 0.0
    %272 = vmatpush1.msra.mxu0 0.0
    %273 = vmatprep.subr.mxu0 0.0
    %274 = vmatpush1.msra.mxu0 0.0
    %275 = vmatprep.subr.mxu0 0.0
    %276 = vmatpush1.msra.mxu0 0.0
    %277 = vmatprep.subr.mxu0 0.0
    %278 = vmatpush1.msra.mxu0 0.0
    %279 = vmatprep.subr.mxu0 0.0
    %280 = vmatpush1.msra.mxu0 0.0
    %281 = vmatprep.subr.mxu0 0.0
    %282 = vmatpush1.msra.mxu0 0.0
    %283 = vmatprep.subr.mxu0 0.0
    %284 = vmatpush1.msra.mxu0 0.0
    %285 = vmatprep.subr.mxu0 0.0
    %286 = vmatpush1.msra.mxu0 %v253
    %287 = vmatprep.subr.mxu0 0.0
    %288 = vmatpush1.msra.mxu0 %v252
    %289 = vmatprep.subr.mxu0 0.0
    %290 = vmatpush1.msra.mxu0 %v251
    %291 = vmatprep.subr.mxu0 0.0
    %292 = vmatpush1.msra.mxu0 %v250
    %293 = vmatprep.subr.mxu0 0.0
    %294 = vmatpush2.msra.mxu0 0.0
    %295 = vmatprep.subr.mxu0 0.0
    %296 = vmatpush2.msra.mxu0 0.0
    %297 = vmatprep.subr.mxu0 0.0
    %298 = vmatpush2.msra.mxu0 0.0
    %299 = vmatprep.subr.mxu0 0.0
    %300 = vmatpush2.msra.mxu0 0.0
    %301 = vmatprep.subr.mxu0 0.0
    %302 = vmatpush2.msra.mxu0 0.0
    %303 = vmatprep.subr.mxu0 0.0
    %304 = vmatpush2.msra.mxu0 0.0
    %305 = vmatprep.subr.mxu0 0.0
    %306 = vmatpush2.msra.mxu0 0.0
    %307 = vmatprep.subr.mxu0 0.0
    %308 = vmatpush2.msra.mxu0 0.0
    %309 = vmatprep.subr.mxu0 0.0
    %310 = vmatpush2.msra.mxu0 0.0
    %311 = vmatprep.subr.mxu0 0.0
    %312 = vmatpush2.msra.mxu0 0.0
    %313 = vmatprep.subr.mxu0 0.0
    %314 = vmatpush2.msra.mxu0 0.0
    %315 = vmatprep.subr.mxu0 0.0
    %316 = vmatpush2.msra.mxu0 0.0
    %317 = vmatprep.subr.mxu0 0.0
    %318 = vmatpush2.msra.mxu0 0.0
    %319 = vmatprep.subr.mxu0 0.0
    %320 = vmatpush2.msra.mxu0 0.0
    %321 = vmatprep.subr.mxu0 0.0
    %322 = vmatpush2.msra.mxu0 0.0
    %323 = vmatprep.subr.mxu0 0.0
    %324 = vmatpush2.msra.mxu0 0.0
    %325 = vmatprep.mubr.f32.mxu0 0.0
    %326 = vmatmul.mubr.f32.gmra.mxu0 %v122
    %v327 = vpop.f32.mrf.mxu0
    %v328 = vadd.f32 %v259, %v327
    %v329 = vpop.f32.mrf.mxu0
    %330 = vmatprep.mubr.f32.mxu0 0.0
    %331 = vmatmul.mubr.f32.gmra.mxu0 %v125
    %v332 = vpop.f32.mrf.mxu0
    %v333 = vadd.f32 %v259, %v332
    %v334 = vpop.f32.mrf.mxu0
    %335 = vmatprep.mubr.f32.mxu0 0.0
    %336 = vmatmul.mubr.f32.gmra.mxu0 %v128
    %v337 = vpop.f32.mrf.mxu0
    %v338 = vadd.f32 %v259, %v337
    %v339 = vpop.f32.mrf.mxu0
    %340 = vmatprep.mubr.f32.mxu0 0.0
    %341 = vmatmul.mubr.f32.gmra.mxu0 %v131
    %v342 = vpop.f32.mrf.mxu0
    %v343 = vadd.f32 %v259, %v342
    %v344 = vpop.f32.mrf.mxu0
    %345 = vmatprep.mubr.f32.mxu0 0.0
    %346 = vmatmul.mubr.f32.gmra.mxu0 %v134
    %v347 = vpop.f32.mrf.mxu0
    %v348 = vadd.f32 %v259, %v347
    %v349 = vpop.f32.mrf.mxu0
    %350 = vmatprep.mubr.f32.mxu0 0.0
    %351 = vmatmul.mubr.f32.gmra.mxu0 %v137
    %v352 = vpop.f32.mrf.mxu0
    %v353 = vadd.f32 %v259, %v352
    %v354 = vpop.f32.mrf.mxu0
    %355 = vmatprep.mubr.f32.mxu0 0.0
    %356 = vmatmul.mubr.f32.gmra.mxu0 %v140
    %v357 = vpop.f32.mrf.mxu0
    %v358 = vadd.f32 %v259, %v357
    %v359 = vpop.f32.mrf.mxu0
    %360 = vmatprep.mubr.f32.mxu0 0.0
    %361 = vmatmul.mubr.f32.gmra.mxu0 %v143
    %v362 = vpop.f32.mrf.mxu0
    %v363 = vadd.f32 %v259, %v362
    %v364 = vpop.f32.mrf.mxu0
    %365 = vdwg.mxu0
    %v366 = vld [vmem:[#allocation8] sm:$0xff]
    %v367 = vld [vmem:[#allocation8 + $0x8] sm:$0xff]
    %v368 = vld [vmem:[#allocation8 + $0x10] sm:$0xff]
    %v369 = vld [vmem:[#allocation8 + $0x18] sm:$0xff]
    %v370 = vld [vmem:[%s7] sm:$0x1]
    %v372 = vlaneseq
    %v373 = vshrl.u32 %v372, 7
    %v374 = vsub.s32 0, %v373
    %v375 = vrot.slane %v370, %v374
    %377 = vmatprep.subr.mxu0 0.0
    %378 = vmatpush1.msra.mxu0 0.0
    %379 = vmatprep.subr.mxu0 0.0
    %380 = vmatpush1.msra.mxu0 0.0
    %381 = vmatprep.subr.mxu0 0.0
    %382 = vmatpush1.msra.mxu0 0.0
    %383 = vmatprep.subr.mxu0 0.0
    %384 = vmatpush1.msra.mxu0 0.0
    %385 = vmatprep.subr.mxu0 0.0
    %386 = vmatpush1.msra.mxu0 0.0
    %387 = vmatprep.subr.mxu0 0.0
    %388 = vmatpush1.msra.mxu0 0.0
    %389 = vmatprep.subr.mxu0 0.0
    %390 = vmatpush1.msra.mxu0 0.0
    %391 = vmatprep.subr.mxu0 0.0
    %392 = vmatpush1.msra.mxu0 0.0
    %393 = vmatprep.subr.mxu0 0.0
    %394 = vmatpush1.msra.mxu0 0.0
    %395 = vmatprep.subr.mxu0 0.0
    %396 = vmatpush1.msra.mxu0 0.0
    %397 = vmatprep.subr.mxu0 0.0
    %398 = vmatpush1.msra.mxu0 0.0
    %399 = vmatprep.subr.mxu0 0.0
    %400 = vmatpush1.msra.mxu0 0.0
    %401 = vmatprep.subr.mxu0 0.0
    %402 = vmatpush1.msra.mxu0 %v369
    %403 = vmatprep.subr.mxu0 0.0
    %404 = vmatpush1.msra.mxu0 %v368
    %405 = vmatprep.subr.mxu0 0.0
    %406 = vmatpush1.msra.mxu0 %v367
    %407 = vmatprep.subr.mxu0 0.0
    %408 = vmatpush1.msra.mxu0 %v366
    %409 = vmatprep.subr.mxu0 0.0
    %410 = vmatpush2.msra.mxu0 0.0
    %411 = vmatprep.subr.mxu0 0.0
    %412 = vmatpush2.msra.mxu0 0.0
    %413 = vmatprep.subr.mxu0 0.0
    %414 = vmatpush2.msra.mxu0 0.0
    %415 = vmatprep.subr.mxu0 0.0
    %416 = vmatpush2.msra.mxu0 0.0
    %417 = vmatprep.subr.mxu0 0.0
    %418 = vmatpush2.msra.mxu0 0.0
    %419 = vmatprep.subr.mxu0 0.0
    %420 = vmatpush2.msra.mxu0 0.0
    %421 = vmatprep.subr.mxu0 0.0
    %422 = vmatpush2.msra.mxu0 0.0
    %423 = vmatprep.subr.mxu0 0.0
    %424 = vmatpush2.msra.mxu0 0.0
    %425 = vmatprep.subr.mxu0 0.0
    %426 = vmatpush2.msra.mxu0 0.0
    %427 = vmatprep.subr.mxu0 0.0
    %428 = vmatpush2.msra.mxu0 0.0
    %429 = vmatprep.subr.mxu0 0.0
    %430 = vmatpush2.msra.mxu0 0.0
    %431 = vmatprep.subr.mxu0 0.0
    %432 = vmatpush2.msra.mxu0 0.0
    %433 = vmatprep.subr.mxu0 0.0
    %434 = vmatpush2.msra.mxu0 0.0
    %435 = vmatprep.subr.mxu0 0.0
    %436 = vmatpush2.msra.mxu0 0.0
    %437 = vmatprep.subr.mxu0 0.0
    %438 = vmatpush2.msra.mxu0 0.0
    %439 = vmatprep.subr.mxu0 0.0
    %440 = vmatpush2.msra.mxu0 0.0
    %441 = vmatprep.mubr.f32.mxu0 0.0
    %442 = vmatmul.mubr.f32.gmra.mxu0 %v122
    %v443 = vpop.f32.mrf.mxu0
    %v444 = vadd.f32 %v375, %v443
    %v445 = vpop.f32.mrf.mxu0
    %446 = vmatprep.mubr.f32.mxu0 0.0
    %447 = vmatmul.mubr.f32.gmra.mxu0 %v125
    %v448 = vpop.f32.mrf.mxu0
    %v449 = vadd.f32 %v375, %v448
    %v450 = vpop.f32.mrf.mxu0
    %451 = vmatprep.mubr.f32.mxu0 0.0
    %452 = vmatmul.mubr.f32.gmra.mxu0 %v128
    %v453 = vpop.f32.mrf.mxu0
    %v454 = vadd.f32 %v375, %v453
    %v455 = vpop.f32.mrf.mxu0
    %456 = vmatprep.mubr.f32.mxu0 0.0
    %457 = vmatmul.mubr.f32.gmra.mxu0 %v131
    %v458 = vpop.f32.mrf.mxu0
    %v459 = vadd.f32 %v375, %v458
    %v460 = vpop.f32.mrf.mxu0
    %461 = vmatprep.mubr.f32.mxu0 0.0
    %462 = vmatmul.mubr.f32.gmra.mxu0 %v134
    %v463 = vpop.f32.mrf.mxu0
    %v464 = vadd.f32 %v375, %v463
    %v465 = vpop.f32.mrf.mxu0
    %466 = vmatprep.mubr.f32.mxu0 0.0
    %467 = vmatmul.mubr.f32.gmra.mxu0 %v137
    %v468 = vpop.f32.mrf.mxu0
    %v469 = vadd.f32 %v375, %v468
    %v470 = vpop.f32.mrf.mxu0
    %471 = vmatprep.mubr.f32.mxu0 0.0
    %472 = vmatmul.mubr.f32.gmra.mxu0 %v140
    %v473 = vpop.f32.mrf.mxu0
    %v474 = vadd.f32 %v375, %v473
    %v475 = vpop.f32.mrf.mxu0
    %476 = vmatprep.mubr.f32.mxu0 0.0
    %477 = vmatmul.mubr.f32.gmra.mxu0 %v143
    %v478 = vpop.f32.mrf.mxu0
    %v479 = vadd.f32 %v375, %v478
    %v480 = vpop.f32.mrf.mxu0
    %481 = vdwg.mxu0
    %v482 = vlaneseq
    %v483 = vshrl.u32 %v482, 7
    %v484 = vadd.s32 %v483, 8
    %v485 = vadd.s32 %v483, 16
    %v486 = vadd.s32 %v483, 24
    %v487 = vlaneseq
    %v488 = vand.u32 %v487, 127
    %vm489 = vcmp.ge.s32.totalorder %v483, 0
    %vm490 = vcmp.ge.s32.totalorder %v484, 0
    %vm491 = vcmp.ge.s32.totalorder %v485, 0
    %vm492 = vcmp.ge.s32.totalorder %v486, 0
    %vm493 = vcmp.lt.s32.totalorder %v483, 8
    %vm494 = vcmp.lt.s32.totalorder %v484, 8
    %vm495 = vcmp.lt.s32.totalorder %v485, 8
    %vm496 = vcmp.lt.s32.totalorder %v486, 8
    %vm497 = vmand %vm489, %vm493
    %vm498 = vmand %vm490, %vm494
    %vm499 = vmand %vm491, %vm495
    %vm500 = vmand %vm492, %vm496
    %vm501 = vcmp.ge.s32.totalorder %v488, 0
    %vm502 = vcmp.lt.s32.totalorder %v488, 8
    %vm503 = vmand %vm501, %vm502
    %v504 = vsel %vm497, 1, 0
    %v505 = vsel %vm498, 1, 0
    %v506 = vsel %vm499, 1, 0
    %v507 = vsel %vm500, 1, 0
    %vm508 = vcmp.eq.s32.totalorder %v504, 1
    %vm509 = vcmp.eq.s32.totalorder %v505, 1
    %vm510 = vcmp.eq.s32.totalorder %v506, 1
    %vm511 = vcmp.eq.s32.totalorder %v507, 1
    %v512 = vsel %vm503, 1, 0
    %vm513 = vcmp.eq.s32.totalorder %v512, 1
    %vm514 = vmand %vm508, %vm513
    %vm515 = vmand %vm509, %vm513
    %vm516 = vmand %vm510, %vm513
    %vm517 = vmand %vm511, %vm513
    %v518 = vsel %vm514, 1, 0
    %v519 = vsel %vm515, 1, 0
    %v520 = vsel %vm516, 1, 0
    %v521 = vsel %vm517, 1, 0
    %v522 = vcvt.s32.f32 %v518
    %v523 = vcvt.s32.f32 %v519
    %v524 = vcvt.s32.f32 %v520
    %v525 = vcvt.s32.f32 %v521
    %v526 = vadd.f32 %v522, 0.0
    %v527 = vadd.f32 %v523, 0.0
    %v528 = vadd.f32 %v524, 0.0
    %v529 = vadd.f32 %v525, 0.0
    %vm530 = vcmp.ge.s32.totalorder %v483, 8
    %vm531 = vcmp.ge.s32.totalorder %v484, 8
    %vm532 = vcmp.ge.s32.totalorder %v485, 8
    %vm533 = vcmp.ge.s32.totalorder %v486, 8
    %vm534 = vcmp.lt.s32.totalorder %v483, 16
    %vm535 = vcmp.lt.s32.totalorder %v484, 16
    %vm536 = vcmp.lt.s32.totalorder %v485, 16
    %vm537 = vcmp.lt.s32.totalorder %v486, 16
    %vm538 = vmand %vm530, %vm534
    %vm539 = vmand %vm531, %vm535
    %vm540 = vmand %vm532, %vm536
    %vm541 = vmand %vm533, %vm537
    %vm542 = vcmp.ge.s32.totalorder %v488, 8
    %vm543 = vcmp.lt.s32.totalorder %v488, 16
    %vm544 = vmand %vm542, %vm543
    %v545 = vsel %vm538, 1, 0
    %v546 = vsel %vm539, 1, 0
    %v547 = vsel %vm540, 1, 0
    %v548 = vsel %vm541, 1, 0
    %vm549 = vcmp.eq.s32.totalorder %v545, 1
    %vm550 = vcmp.eq.s32.totalorder %v546, 1
    %vm551 = vcmp.eq.s32.totalorder %v547, 1
    %vm552 = vcmp.eq.s32.totalorder %v548, 1
    %v553 = vsel %vm544, 1, 0
    %vm554 = vcmp.eq.s32.totalorder %v553, 1
    %vm555 = vmand %vm549, %vm554
    %vm556 = vmand %vm550, %vm554
    %vm557 = vmand %vm551, %vm554
    %vm558 = vmand %vm552, %vm554
    %v559 = vsel %vm555, 1, 0
    %v560 = vsel %vm556, 1, 0
    %v561 = vsel %vm557, 1, 0
    %v562 = vsel %vm558, 1, 0
    %v563 = vcvt.s32.f32 %v559
    %v564 = vcvt.s32.f32 %v560
    %v565 = vcvt.s32.f32 %v561
    %v566 = vcvt.s32.f32 %v562
    %v567 = vadd.f32 %v526, %v563
    %v568 = vadd.f32 %v527, %v564
    %v569 = vadd.f32 %v528, %v565
    %v570 = vadd.f32 %v529, %v566
    %vm571 = vcmp.ge.s32.totalorder %v483, 16
    %vm572 = vcmp.ge.s32.totalorder %v484, 16
    %vm573 = vcmp.ge.s32.totalorder %v485, 16
    %vm574 = vcmp.ge.s32.totalorder %v486, 16
    %vm575 = vcmp.lt.s32.totalorder %v483, 24
    %vm576 = vcmp.lt.s32.totalorder %v484, 24
    %vm577 = vcmp.lt.s32.totalorder %v485, 24
    %vm578 = vcmp.lt.s32.totalorder %v486, 24
    %vm579 = vmand %vm571, %vm575
    %vm580 = vmand %vm572, %vm576
    %vm581 = vmand %vm573, %vm577
    %vm582 = vmand %vm574, %vm578
    %vm583 = vcmp.ge.s32.totalorder %v488, 16
    %vm584 = vcmp.lt.s32.totalorder %v488, 24
    %vm585 = vmand %vm583, %vm584
    %v586 = vsel %vm579, 1, 0
    %v587 = vsel %vm580, 1, 0
    %v588 = vsel %vm581, 1, 0
    %v589 = vsel %vm582, 1, 0
    %vm590 = vcmp.eq.s32.totalorder %v586, 1
    %vm591 = vcmp.eq.s32.totalorder %v587, 1
    %vm592 = vcmp.eq.s32.totalorder %v588, 1
    %vm593 = vcmp.eq.s32.totalorder %v589, 1
    %v594 = vsel %vm585, 1, 0
    %vm595 = vcmp.eq.s32.totalorder %v594, 1
    %vm596 = vmand %vm590, %vm595
    %vm597 = vmand %vm591, %vm595
    %vm598 = vmand %vm592, %vm595
    %vm599 = vmand %vm593, %vm595
    %v600 = vsel %vm596, 1, 0
    %v601 = vsel %vm597, 1, 0
    %v602 = vsel %vm598, 1, 0
    %v603 = vsel %vm599, 1, 0
    %v604 = vcvt.s32.f32 %v600
    %v605 = vcvt.s32.f32 %v601
    %v606 = vcvt.s32.f32 %v602
    %v607 = vcvt.s32.f32 %v603
    %v608 = vadd.f32 %v567, %v604
    %v609 = vadd.f32 %v568, %v605
    %v610 = vadd.f32 %v569, %v606
    %v611 = vadd.f32 %v570, %v607
    %vm612 = vcmp.ge.s32.totalorder %v483, 24
    %vm613 = vcmp.ge.s32.totalorder %v484, 24
    %vm614 = vcmp.ge.s32.totalorder %v485, 24
    %vm615 = vcmp.ge.s32.totalorder %v486, 24
    %vm616 = vcmp.lt.s32.totalorder %v483, 32
    %vm617 = vcmp.lt.s32.totalorder %v484, 32
    %vm618 = vcmp.lt.s32.totalorder %v485, 32
    %vm619 = vcmp.lt.s32.totalorder %v486, 32
    %vm620 = vmand %vm612, %vm616
    %vm621 = vmand %vm613, %vm617
    %vm622 = vmand %vm614, %vm618
    %vm623 = vmand %vm615, %vm619
    %vm624 = vcmp.ge.s32.totalorder %v488, 24
    %vm625 = vcmp.lt.s32.totalorder %v488, 32
    %vm626 = vmand %vm624, %vm625
    %v627 = vsel %vm620, 1, 0
    %v628 = vsel %vm621, 1, 0
    %v629 = vsel %vm622, 1, 0
    %v630 = vsel %vm623, 1, 0
    %vm631 = vcmp.eq.s32.totalorder %v627, 1
    %vm632 = vcmp.eq.s32.totalorder %v628, 1
    %vm633 = vcmp.eq.s32.totalorder %v629, 1
    %vm634 = vcmp.eq.s32.totalorder %v630, 1
    %v635 = vsel %vm626, 1, 0
    %vm636 = vcmp.eq.s32.totalorder %v635, 1
    %vm637 = vmand %vm631, %vm636
    %vm638 = vmand %vm632, %vm636
    %vm639 = vmand %vm633, %vm636
    %vm640 = vmand %vm634, %vm636
    %v641 = vsel %vm637, 1, 0
    %v642 = vsel %vm638, 1, 0
    %v643 = vsel %vm639, 1, 0
    %v644 = vsel %vm640, 1, 0
    %v645 = vcvt.s32.f32 %v641
    %v646 = vcvt.s32.f32 %v642
    %v647 = vcvt.s32.f32 %v643
    %v648 = vcvt.s32.f32 %v644
    %v649 = vadd.f32 %v608, %v645
    %v650 = vadd.f32 %v609, %v646
    %v651 = vadd.f32 %v610, %v647
    %v652 = vadd.f32 %v611, %v648
    %v653 = vmul.f32 %v328, %v649
    %v654 = vmul.f32 %v328, %v650
    %v655 = vmul.f32 %v328, %v651
    %v656 = vmul.f32 %v328, %v652
    %v657 = vmul.f32 %v333, %v649
    %v658 = vmul.f32 %v333, %v650
    %v659 = vmul.f32 %v333, %v651
    %v660 = vmul.f32 %v333, %v652
    %v661 = vmul.f32 %v338, %v649
    %v662 = vmul.f32 %v338, %v650
    %v663 = vmul.f32 %v338, %v651
    %v664 = vmul.f32 %v338, %v652
    %v665 = vmul.f32 %v343, %v649
    %v666 = vmul.f32 %v343, %v650
    %v667 = vmul.f32 %v343, %v651
    %v668 = vmul.f32 %v343, %v652
    %v669 = vmul.f32 %v348, %v649
    %v670 = vmul.f32 %v348, %v650
    %v671 = vmul.f32 %v348, %v651
    %v672 = vmul.f32 %v348, %v652
    %v673 = vmul.f32 %v353, %v649
    %v674 = vmul.f32 %v353, %v650
    %v675 = vmul.f32 %v353, %v651
    %v676 = vmul.f32 %v353, %v652
    %v677 = vmul.f32 %v358, %v649
    %v678 = vmul.f32 %v358, %v650
    %v679 = vmul.f32 %v358, %v651
    %v680 = vmul.f32 %v358, %v652
    %v681 = vmul.f32 %v363, %v649
    %v682 = vmul.f32 %v363, %v650
    %v683 = vmul.f32 %v363, %v651
    %v684 = vmul.f32 %v363, %v652
    %v685 = vmul.f32 %v444, %v649
    %v686 = vmul.f32 %v444, %v650
    %v687 = vmul.f32 %v444, %v651
    %v688 = vmul.f32 %v444, %v652
    %v689 = vmul.f32 %v449, %v649
    %v690 = vmul.f32 %v449, %v650
    %v691 = vmul.f32 %v449, %v651
    %v692 = vmul.f32 %v449, %v652
    %v693 = vmul.f32 %v454, %v649
    %v694 = vmul.f32 %v454, %v650
    %v695 = vmul.f32 %v454, %v651
    %v696 = vmul.f32 %v454, %v652
    %v697 = vmul.f32 %v459, %v649
    %v698 = vmul.f32 %v459, %v650
    %v699 = vmul.f32 %v459, %v651
    %v700 = vmul.f32 %v459, %v652
    %v701 = vmul.f32 %v464, %v649
    %v702 = vmul.f32 %v464, %v650
    %v703 = vmul.f32 %v464, %v651
    %v704 = vmul.f32 %v464, %v652
    %v705 = vmul.f32 %v469, %v649
    %v706 = vmul.f32 %v469, %v650
    %v707 = vmul.f32 %v469, %v651
    %v708 = vmul.f32 %v469, %v652
    %v709 = vmul.f32 %v474, %v649
    %v710 = vmul.f32 %v474, %v650
    %v711 = vmul.f32 %v474, %v651
    %v712 = vmul.f32 %v474, %v652
    %v713 = vmul.f32 %v479, %v649
    %v714 = vmul.f32 %v479, %v650
    %v715 = vmul.f32 %v479, %v651
    %v716 = vmul.f32 %v479, %v652
    %v718 = vsel %vm120, %v212, 0
    %v721 = vsel %vm120, %v653, 0
    %v724 = vsel %vm120, %v654, 0
    %v727 = vsel %vm120, %v655, 0
    %v730 = vsel %vm120, %v656, 0
    %732 = vmatprep.subr.mxu0 0.0
    %733 = vmatpush1.xpose.msra.mxu0 0.0
    %734 = vmatprep.subr.mxu0 0.0
    %735 = vmatpush1.xpose.msra.mxu0 0.0
    %736 = vmatprep.subr.mxu0 0.0
    %737 = vmatpush1.xpose.msra.mxu0 0.0
    %738 = vmatprep.subr.mxu0 0.0
    %739 = vmatpush1.xpose.msra.mxu0 0.0
    %740 = vmatprep.subr.mxu0 0.0
    %741 = vmatpush1.xpose.msra.mxu0 0.0
    %742 = vmatprep.subr.mxu0 0.0
    %743 = vmatpush1.xpose.msra.mxu0 0.0
    %744 = vmatprep.subr.mxu0 0.0
    %745 = vmatpush1.xpose.msra.mxu0 0.0
    %746 = vmatprep.subr.mxu0 0.0
    %747 = vmatpush1.xpose.msra.mxu0 0.0
    %748 = vmatprep.subr.mxu0 0.0
    %749 = vmatpush1.xpose.msra.mxu0 0.0
    %750 = vmatprep.subr.mxu0 0.0
    %751 = vmatpush1.xpose.msra.mxu0 0.0
    %752 = vmatprep.subr.mxu0 0.0
    %753 = vmatpush1.xpose.msra.mxu0 0.0
    %754 = vmatprep.subr.mxu0 0.0
    %755 = vmatpush1.xpose.msra.mxu0 0.0
    %756 = vmatprep.subr.mxu0 0.0
    %757 = vmatpush1.xpose.msra.mxu0 %v730
    %758 = vmatprep.subr.mxu0 0.0
    %759 = vmatpush1.xpose.msra.mxu0 %v727
    %760 = vmatprep.subr.mxu0 0.0
    %761 = vmatpush1.xpose.msra.mxu0 %v724
    %762 = vmatprep.subr.mxu0 0.0
    %763 = vmatpush1.xpose.msra.mxu0 %v721
    %764 = vmatprep.subr.mxu0 0.0
    %765 = vmatpush2.xpose.msra.mxu0 0.0
    %766 = vmatprep.subr.mxu0 0.0
    %767 = vmatpush2.xpose.msra.mxu0 0.0
    %768 = vmatprep.subr.mxu0 0.0
    %769 = vmatpush2.xpose.msra.mxu0 0.0
    %770 = vmatprep.subr.mxu0 0.0
    %771 = vmatpush2.xpose.msra.mxu0 0.0
    %772 = vmatprep.subr.mxu0 0.0
    %773 = vmatpush2.xpose.msra.mxu0 0.0
    %774 = vmatprep.subr.mxu0 0.0
    %775 = vmatpush2.xpose.msra.mxu0 0.0
    %776 = vmatprep.subr.mxu0 0.0
    %777 = vmatpush2.xpose.msra.mxu0 0.0
    %778 = vmatprep.subr.mxu0 0.0
    %779 = vmatpush2.xpose.msra.mxu0 0.0
    %780 = vmatprep.subr.mxu0 0.0
    %781 = vmatpush2.xpose.msra.mxu0 0.0
    %782 = vmatprep.subr.mxu0 0.0
    %783 = vmatpush2.xpose.msra.mxu0 0.0
    %784 = vmatprep.subr.mxu0 0.0
    %785 = vmatpush2.xpose.msra.mxu0 0.0
    %786 = vmatprep.subr.mxu0 0.0
    %787 = vmatpush2.xpose.msra.mxu0 0.0
    %788 = vmatprep.subr.mxu0 0.0
    %789 = vmatpush2.xpose.msra.mxu0 0.0
    %790 = vmatprep.subr.mxu0 0.0
    %791 = vmatpush2.xpose.msra.mxu0 0.0
    %792 = vmatprep.subr.mxu0 0.0
    %793 = vmatpush2.xpose.msra.mxu0 0.0
    %794 = vmatprep.subr.mxu0 0.0
    %795 = vmatpush2.xpose.msra.mxu0 0.0
    %796 = vmatprep.mubr.f32.mxu0 0.0
    %797 = vmatmul.mubr.f32.gmra.mxu0 %v718
    %v798 = vpop.f32.mrf.mxu0
    %v799 = vadd.f32 0.0, %v798
    %v800 = vpop.f32.mrf.mxu0
    %801 = vdwg.mxu0
    %v803 = vsel %vm120, %v217, 0
    %v806 = vsel %vm120, %v657, 0
    %v809 = vsel %vm120, %v658, 0
    %v812 = vsel %vm120, %v659, 0
    %v815 = vsel %vm120, %v660, 0
    %817 = vmatprep.subr.mxu0 0.0
    %818 = vmatpush1.xpose.msra.mxu0 0.0
    %819 = vmatprep.subr.mxu0 0.0
    %820 = vmatpush1.xpose.msra.mxu0 0.0
    %821 = vmatprep.subr.mxu0 0.0
    %822 = vmatpush1.xpose.msra.mxu0 0.0
    %823 = vmatprep.subr.mxu0 0.0
    %824 = vmatpush1.xpose.msra.mxu0 0.0
    %825 = vmatprep.subr.mxu0 0.0
    %826 = vmatpush1.xpose.msra.mxu0 0.0
    %827 = vmatprep.subr.mxu0 0.0
    %828 = vmatpush1.xpose.msra.mxu0 0.0
    %829 = vmatprep.subr.mxu0 0.0
    %830 = vmatpush1.xpose.msra.mxu0 0.0
    %831 = vmatprep.subr.mxu0 0.0
    %832 = vmatpush1.xpose.msra.mxu0 0.0
    %833 = vmatprep.subr.mxu0 0.0
    %834 = vmatpush1.xpose.msra.mxu0 0.0
    %835 = vmatprep.subr.mxu0 0.0
    %836 = vmatpush1.xpose.msra.mxu0 0.0
    %837 = vmatprep.subr.mxu0 0.0
    %838 = vmatpush1.xpose.msra.mxu0 0.0
    %839 = vmatprep.subr.mxu0 0.0
    %840 = vmatpush1.xpose.msra.mxu0 0.0
    %841 = vmatprep.subr.mxu0 0.0
    %842 = vmatpush1.xpose.msra.mxu0 %v815
    %843 = vmatprep.subr.mxu0 0.0
    %844 = vmatpush1.xpose.msra.mxu0 %v812
    %845 = vmatprep.subr.mxu0 0.0
    %846 = vmatpush1.xpose.msra.mxu0 %v809
    %847 = vmatprep.subr.mxu0 0.0
    %848 = vmatpush1.xpose.msra.mxu0 %v806
    %849 = vmatprep.subr.mxu0 0.0
    %850 = vmatpush2.xpose.msra.mxu0 0.0
    %851 = vmatprep.subr.mxu0 0.0
    %852 = vmatpush2.xpose.msra.mxu0 0.0
    %853 = vmatprep.subr.mxu0 0.0
    %854 = vmatpush2.xpose.msra.mxu0 0.0
    %855 = vmatprep.subr.mxu0 0.0
    %856 = vmatpush2.xpose.msra.mxu0 0.0
    %857 = vmatprep.subr.mxu0 0.0
    %858 = vmatpush2.xpose.msra.mxu0 0.0
    %859 = vmatprep.subr.mxu0 0.0
    %860 = vmatpush2.xpose.msra.mxu0 0.0
    %861 = vmatprep.subr.mxu0 0.0
    %862 = vmatpush2.xpose.msra.mxu0 0.0
    %863 = vmatprep.subr.mxu0 0.0
    %864 = vmatpush2.xpose.msra.mxu0 0.0
    %865 = vmatprep.subr.mxu0 0.0
    %866 = vmatpush2.xpose.msra.mxu0 0.0
    %867 = vmatprep.subr.mxu0 0.0
    %868 = vmatpush2.xpose.msra.mxu0 0.0
    %869 = vmatprep.subr.mxu0 0.0
    %870 = vmatpush2.xpose.msra.mxu0 0.0
    %871 = vmatprep.subr.mxu0 0.0
    %872 = vmatpush2.xpose.msra.mxu0 0.0
    %873 = vmatprep.subr.mxu0 0.0
    %874 = vmatpush2.xpose.msra.mxu0 0.0
    %875 = vmatprep.subr.mxu0 0.0
    %876 = vmatpush2.xpose.msra.mxu0 0.0
    %877 = vmatprep.subr.mxu0 0.0
    %878 = vmatpush2.xpose.msra.mxu0 0.0
    %879 = vmatprep.subr.mxu0 0.0
    %880 = vmatpush2.xpose.msra.mxu0 0.0
    %881 = vmatprep.mubr.f32.mxu0 0.0
    %882 = vmatmul.mubr.f32.gmra.mxu0 %v803
    %v883 = vpop.f32.mrf.mxu0
    %v884 = vadd.f32 0.0, %v883
    %v885 = vpop.f32.mrf.mxu0
    %886 = vdwg.mxu0
    %v888 = vsel %vm120, %v222, 0
    %v891 = vsel %vm120, %v661, 0
    %v894 = vsel %vm120, %v662, 0
    %v897 = vsel %vm120, %v663, 0
    %v900 = vsel %vm120, %v664, 0
    %902 = vmatprep.subr.mxu0 0.0
    %903 = vmatpush1.xpose.msra.mxu0 0.0
    %904 = vmatprep.subr.mxu0 0.0
    %905 = vmatpush1.xpose.msra.mxu0 0.0
    %906 = vmatprep.subr.mxu0 0.0
    %907 = vmatpush1.xpose.msra.mxu0 0.0
    %908 = vmatprep.subr.mxu0 0.0
    %909 = vmatpush1.xpose.msra.mxu0 0.0
    %910 = vmatprep.subr.mxu0 0.0
    %911 = vmatpush1.xpose.msra.mxu0 0.0
    %912 = vmatprep.subr.mxu0 0.0
    %913 = vmatpush1.xpose.msra.mxu0 0.0
    %914 = vmatprep.subr.mxu0 0.0
    %915 = vmatpush1.xpose.msra.mxu0 0.0
    %916 = vmatprep.subr.mxu0 0.0
    %917 = vmatpush1.xpose.msra.mxu0 0.0
    %918 = vmatprep.subr.mxu0 0.0
    %919 = vmatpush1.xpose.msra.mxu0 0.0
    %920 = vmatprep.subr.mxu0 0.0
    %921 = vmatpush1.xpose.msra.mxu0 0.0
    %922 = vmatprep.subr.mxu0 0.0
    %923 = vmatpush1.xpose.msra.mxu0 0.0
    %924 = vmatprep.subr.mxu0 0.0
    %925 = vmatpush1.xpose.msra.mxu0 0.0
    %926 = vmatprep.subr.mxu0 0.0
    %927 = vmatpush1.xpose.msra.mxu0 %v900
    %928 = vmatprep.subr.mxu0 0.0
    %929 = vmatpush1.xpose.msra.mxu0 %v897
    %930 = vmatprep.subr.mxu0 0.0
    %931 = vmatpush1.xpose.msra.mxu0 %v894
    %932 = vmatprep.subr.mxu0 0.0
    %933 = vmatpush1.xpose.msra.mxu0 %v891
    %934 = vmatprep.subr.mxu0 0.0
    %935 = vmatpush2.xpose.msra.mxu0 0.0
    %936 = vmatprep.subr.mxu0 0.0
    %937 = vmatpush2.xpose.msra.mxu0 0.0
    %938 = vmatprep.subr.mxu0 0.0
    %939 = vmatpush2.xpose.msra.mxu0 0.0
    %940 = vmatprep.subr.mxu0 0.0
    %941 = vmatpush2.xpose.msra.mxu0 0.0
    %942 = vmatprep.subr.mxu0 0.0
    %943 = vmatpush2.xpose.msra.mxu0 0.0
    %944 = vmatprep.subr.mxu0 0.0
    %945 = vmatpush2.xpose.msra.mxu0 0.0
    %946 = vmatprep.subr.mxu0 0.0
    %947 = vmatpush2.xpose.msra.mxu0 0.0
    %948 = vmatprep.subr.mxu0 0.0
    %949 = vmatpush2.xpose.msra.mxu0 0.0
    %950 = vmatprep.subr.mxu0 0.0
    %951 = vmatpush2.xpose.msra.mxu0 0.0
    %952 = vmatprep.subr.mxu0 0.0
    %953 = vmatpush2.xpose.msra.mxu0 0.0
    %954 = vmatprep.subr.mxu0 0.0
    %955 = vmatpush2.xpose.msra.mxu0 0.0
    %956 = vmatprep.subr.mxu0 0.0
    %957 = vmatpush2.xpose.msra.mxu0 0.0
    %958 = vmatprep.subr.mxu0 0.0
    %959 = vmatpush2.xpose.msra.mxu0 0.0
    %960 = vmatprep.subr.mxu0 0.0
    %961 = vmatpush2.xpose.msra.mxu0 0.0
    %962 = vmatprep.subr.mxu0 0.0
    %963 = vmatpush2.xpose.msra.mxu0 0.0
    %964 = vmatprep.subr.mxu0 0.0
    %965 = vmatpush2.xpose.msra.mxu0 0.0
    %966 = vmatprep.mubr.f32.mxu0 0.0
    %967 = vmatmul.mubr.f32.gmra.mxu0 %v888
    %v968 = vpop.f32.mrf.mxu0
    %v969 = vadd.f32 0.0, %v968
    %v970 = vpop.f32.mrf.mxu0
    %971 = vdwg.mxu0
    %v973 = vsel %vm120, %v227, 0
    %v976 = vsel %vm120, %v665, 0
    %v979 = vsel %vm120, %v666, 0
    %v982 = vsel %vm120, %v667, 0
    %v985 = vsel %vm120, %v668, 0
    %987 = vmatprep.subr.mxu0 0.0
    %988 = vmatpush1.xpose.msra.mxu0 0.0
    %989 = vmatprep.subr.mxu0 0.0
    %990 = vmatpush1.xpose.msra.mxu0 0.0
    %991 = vmatprep.subr.mxu0 0.0
    %992 = vmatpush1.xpose.msra.mxu0 0.0
    %993 = vmatprep.subr.mxu0 0.0
    %994 = vmatpush1.xpose.msra.mxu0 0.0
    %995 = vmatprep.subr.mxu0 0.0
    %996 = vmatpush1.xpose.msra.mxu0 0.0
    %997 = vmatprep.subr.mxu0 0.0
    %998 = vmatpush1.xpose.msra.mxu0 0.0
    %999 = vmatprep.subr.mxu0 0.0
    %1000 = vmatpush1.xpose.msra.mxu0 0.0
    %1001 = vmatprep.subr.mxu0 0.0
    %1002 = vmatpush1.xpose.msra.mxu0 0.0
    %1003 = vmatprep.subr.mxu0 0.0
    %1004 = vmatpush1.xpose.msra.mxu0 0.0
    %1005 = vmatprep.subr.mxu0 0.0
    %1006 = vmatpush1.xpose.msra.mxu0 0.0
    %1007 = vmatprep.subr.mxu0 0.0
    %1008 = vmatpush1.xpose.msra.mxu0 0.0
    %1009 = vmatprep.subr.mxu0 0.0
    %1010 = vmatpush1.xpose.msra.mxu0 0.0
    %1011 = vmatprep.subr.mxu0 0.0
    %1012 = vmatpush1.xpose.msra.mxu0 %v985
    %1013 = vmatprep.subr.mxu0 0.0
    %1014 = vmatpush1.xpose.msra.mxu0 %v982
    %1015 = vmatprep.subr.mxu0 0.0
    %1016 = vmatpush1.xpose.msra.mxu0 %v979
    %1017 = vmatprep.subr.mxu0 0.0
    %1018 = vmatpush1.xpose.msra.mxu0 %v976
    %1019 = vmatprep.subr.mxu0 0.0
    %1020 = vmatpush2.xpose.msra.mxu0 0.0
    %1021 = vmatprep.subr.mxu0 0.0
    %1022 = vmatpush2.xpose.msra.mxu0 0.0
    %1023 = vmatprep.subr.mxu0 0.0
    %1024 = vmatpush2.xpose.msra.mxu0 0.0
    %1025 = vmatprep.subr.mxu0 0.0
    %1026 = vmatpush2.xpose.msra.mxu0 0.0
    %1027 = vmatprep.subr.mxu0 0.0
    %1028 = vmatpush2.xpose.msra.mxu0 0.0
    %1029 = vmatprep.subr.mxu0 0.0
    %1030 = vmatpush2.xpose.msra.mxu0 0.0
    %1031 = vmatprep.subr.mxu0 0.0
    %1032 = vmatpush2.xpose.msra.mxu0 0.0
    %1033 = vmatprep.subr.mxu0 0.0
    %1034 = vmatpush2.xpose.msra.mxu0 0.0
    %1035 = vmatprep.subr.mxu0 0.0
    %1036 = vmatpush2.xpose.msra.mxu0 0.0
    %1037 = vmatprep.subr.mxu0 0.0
    %1038 = vmatpush2.xpose.msra.mxu0 0.0
    %1039 = vmatprep.subr.mxu0 0.0
    %1040 = vmatpush2.xpose.msra.mxu0 0.0
    %1041 = vmatprep.subr.mxu0 0.0
    %1042 = vmatpush2.xpose.msra.mxu0 0.0
    %1043 = vmatprep.subr.mxu0 0.0
    %1044 = vmatpush2.xpose.msra.mxu0 0.0
    %1045 = vmatprep.subr.mxu0 0.0
    %1046 = vmatpush2.xpose.msra.mxu0 0.0
    %1047 = vmatprep.subr.mxu0 0.0
    %1048 = vmatpush2.xpose.msra.mxu0 0.0
    %1049 = vmatprep.subr.mxu0 0.0
    %1050 = vmatpush2.xpose.msra.mxu0 0.0
    %1051 = vmatprep.mubr.f32.mxu0 0.0
    %1052 = vmatmul.mubr.f32.gmra.mxu0 %v973
    %v1053 = vpop.f32.mrf.mxu0
    %v1054 = vadd.f32 0.0, %v1053
    %v1055 = vpop.f32.mrf.mxu0
    %1056 = vdwg.mxu0
    %v1058 = vsel %vm120, %v232, 0
    %v1061 = vsel %vm120, %v669, 0
    %v1064 = vsel %vm120, %v670, 0
    %v1067 = vsel %vm120, %v671, 0
    %v1070 = vsel %vm120, %v672, 0
    %1072 = vmatprep.subr.mxu0 0.0
    %1073 = vmatpush1.xpose.msra.mxu0 0.0
    %1074 = vmatprep.subr.mxu0 0.0
    %1075 = vmatpush1.xpose.msra.mxu0 0.0
    %1076 = vmatprep.subr.mxu0 0.0
    %1077 = vmatpush1.xpose.msra.mxu0 0.0
    %1078 = vmatprep.subr.mxu0 0.0
    %1079 = vmatpush1.xpose.msra.mxu0 0.0
    %1080 = vmatprep.subr.mxu0 0.0
    %1081 = vmatpush1.xpose.msra.mxu0 0.0
    %1082 = vmatprep.subr.mxu0 0.0
    %1083 = vmatpush1.xpose.msra.mxu0 0.0
    %1084 = vmatprep.subr.mxu0 0.0
    %1085 = vmatpush1.xpose.msra.mxu0 0.0
    %1086 = vmatprep.subr.mxu0 0.0
    %1087 = vmatpush1.xpose.msra.mxu0 0.0
    %1088 = vmatprep.subr.mxu0 0.0
    %1089 = vmatpush1.xpose.msra.mxu0 0.0
    %1090 = vmatprep.subr.mxu0 0.0
    %1091 = vmatpush1.xpose.msra.mxu0 0.0
    %1092 = vmatprep.subr.mxu0 0.0
    %1093 = vmatpush1.xpose.msra.mxu0 0.0
    %1094 = vmatprep.subr.mxu0 0.0
    %1095 = vmatpush1.xpose.msra.mxu0 0.0
    %1096 = vmatprep.subr.mxu0 0.0
    %1097 = vmatpush1.xpose.msra.mxu0 %v1070
    %1098 = vmatprep.subr.mxu0 0.0
    %1099 = vmatpush1.xpose.msra.mxu0 %v1067
    %1100 = vmatprep.subr.mxu0 0.0
    %1101 = vmatpush1.xpose.msra.mxu0 %v1064
    %1102 = vmatprep.subr.mxu0 0.0
    %1103 = vmatpush1.xpose.msra.mxu0 %v1061
    %1104 = vmatprep.subr.mxu0 0.0
    %1105 = vmatpush2.xpose.msra.mxu0 0.0
    %1106 = vmatprep.subr.mxu0 0.0
    %1107 = vmatpush2.xpose.msra.mxu0 0.0
    %1108 = vmatprep.subr.mxu0 0.0
    %1109 = vmatpush2.xpose.msra.mxu0 0.0
    %1110 = vmatprep.subr.mxu0 0.0
    %1111 = vmatpush2.xpose.msra.mxu0 0.0
    %1112 = vmatprep.subr.mxu0 0.0
    %1113 = vmatpush2.xpose.msra.mxu0 0.0
    %1114 = vmatprep.subr.mxu0 0.0
    %1115 = vmatpush2.xpose.msra.mxu0 0.0
    %1116 = vmatprep.subr.mxu0 0.0
    %1117 = vmatpush2.xpose.msra.mxu0 0.0
    %1118 = vmatprep.subr.mxu0 0.0
    %1119 = vmatpush2.xpose.msra.mxu0 0.0
    %1120 = vmatprep.subr.mxu0 0.0
    %1121 = vmatpush2.xpose.msra.mxu0 0.0
    %1122 = vmatprep.subr.mxu0 0.0
    %1123 = vmatpush2.xpose.msra.mxu0 0.0
    %1124 = vmatprep.subr.mxu0 0.0
    %1125 = vmatpush2.xpose.msra.mxu0 0.0
    %1126 = vmatprep.subr.mxu0 0.0
    %1127 = vmatpush2.xpose.msra.mxu0 0.0
    %1128 = vmatprep.subr.mxu0 0.0
    %1129 = vmatpush2.xpose.msra.mxu0 0.0
    %1130 = vmatprep.subr.mxu0 0.0
    %1131 = vmatpush2.xpose.msra.mxu0 0.0
    %1132 = vmatprep.subr.mxu0 0.0
    %1133 = vmatpush2.xpose.msra.mxu0 0.0
    %1134 = vmatprep.subr.mxu0 0.0
    %1135 = vmatpush2.xpose.msra.mxu0 0.0
    %1136 = vmatprep.mubr.f32.mxu0 0.0
    %1137 = vmatmul.mubr.f32.gmra.mxu0 %v1058
    %v1138 = vpop.f32.mrf.mxu0
    %v1139 = vadd.f32 0.0, %v1138
    %v1140 = vpop.f32.mrf.mxu0
    %1141 = vdwg.mxu0
    %v1143 = vsel %vm120, %v237, 0
    %v1146 = vsel %vm120, %v673, 0
    %v1149 = vsel %vm120, %v674, 0
    %v1152 = vsel %vm120, %v675, 0
    %v1155 = vsel %vm120, %v676, 0
    %1157 = vmatprep.subr.mxu0 0.0
    %1158 = vmatpush1.xpose.msra.mxu0 0.0
    %1159 = vmatprep.subr.mxu0 0.0
    %1160 = vmatpush1.xpose.msra.mxu0 0.0
    %1161 = vmatprep.subr.mxu0 0.0
    %1162 = vmatpush1.xpose.msra.mxu0 0.0
    %1163 = vmatprep.subr.mxu0 0.0
    %1164 = vmatpush1.xpose.msra.mxu0 0.0
    %1165 = vmatprep.subr.mxu0 0.0
    %1166 = vmatpush1.xpose.msra.mxu0 0.0
    %1167 = vmatprep.subr.mxu0 0.0
    %1168 = vmatpush1.xpose.msra.mxu0 0.0
    %1169 = vmatprep.subr.mxu0 0.0
    %1170 = vmatpush1.xpose.msra.mxu0 0.0
    %1171 = vmatprep.subr.mxu0 0.0
    %1172 = vmatpush1.xpose.msra.mxu0 0.0
    %1173 = vmatprep.subr.mxu0 0.0
    %1174 = vmatpush1.xpose.msra.mxu0 0.0
    %1175 = vmatprep.subr.mxu0 0.0
    %1176 = vmatpush1.xpose.msra.mxu0 0.0
    %1177 = vmatprep.subr.mxu0 0.0
    %1178 = vmatpush1.xpose.msra.mxu0 0.0
    %1179 = vmatprep.subr.mxu0 0.0
    %1180 = vmatpush1.xpose.msra.mxu0 0.0
    %1181 = vmatprep.subr.mxu0 0.0
    %1182 = vmatpush1.xpose.msra.mxu0 %v1155
    %1183 = vmatprep.subr.mxu0 0.0
    %1184 = vmatpush1.xpose.msra.mxu0 %v1152
    %1185 = vmatprep.subr.mxu0 0.0
    %1186 = vmatpush1.xpose.msra.mxu0 %v1149
    %1187 = vmatprep.subr.mxu0 0.0
    %1188 = vmatpush1.xpose.msra.mxu0 %v1146
    %1189 = vmatprep.subr.mxu0 0.0
    %1190 = vmatpush2.xpose.msra.mxu0 0.0
    %1191 = vmatprep.subr.mxu0 0.0
    %1192 = vmatpush2.xpose.msra.mxu0 0.0
    %1193 = vmatprep.subr.mxu0 0.0
    %1194 = vmatpush2.xpose.msra.mxu0 0.0
    %1195 = vmatprep.subr.mxu0 0.0
    %1196 = vmatpush2.xpose.msra.mxu0 0.0
    %1197 = vmatprep.subr.mxu0 0.0
    %1198 = vmatpush2.xpose.msra.mxu0 0.0
    %1199 = vmatprep.subr.mxu0 0.0
    %1200 = vmatpush2.xpose.msra.mxu0 0.0
    %1201 = vmatprep.subr.mxu0 0.0
    %1202 = vmatpush2.xpose.msra.mxu0 0.0
    %1203 = vmatprep.subr.mxu0 0.0
    %1204 = vmatpush2.xpose.msra.mxu0 0.0
    %1205 = vmatprep.subr.mxu0 0.0
    %1206 = vmatpush2.xpose.msra.mxu0 0.0
    %1207 = vmatprep.subr.mxu0 0.0
    %1208 = vmatpush2.xpose.msra.mxu0 0.0
    %1209 = vmatprep.subr.mxu0 0.0
    %1210 = vmatpush2.xpose.msra.mxu0 0.0
    %1211 = vmatprep.subr.mxu0 0.0
    %1212 = vmatpush2.xpose.msra.mxu0 0.0
    %1213 = vmatprep.subr.mxu0 0.0
    %1214 = vmatpush2.xpose.msra.mxu0 0.0
    %1215 = vmatprep.subr.mxu0 0.0
    %1216 = vmatpush2.xpose.msra.mxu0 0.0
    %1217 = vmatprep.subr.mxu0 0.0
    %1218 = vmatpush2.xpose.msra.mxu0 0.0
    %1219 = vmatprep.subr.mxu0 0.0
    %1220 = vmatpush2.xpose.msra.mxu0 0.0
    %1221 = vmatprep.mubr.f32.mxu0 0.0
    %1222 = vmatmul.mubr.f32.gmra.mxu0 %v1143
    %v1223 = vpop.f32.mrf.mxu0
    %v1224 = vadd.f32 0.0, %v1223
    %v1225 = vpop.f32.mrf.mxu0
    %1226 = vdwg.mxu0
    %v1228 = vsel %vm120, %v242, 0
    %v1231 = vsel %vm120, %v677, 0
    %v1234 = vsel %vm120, %v678, 0
    %v1237 = vsel %vm120, %v679, 0
    %v1240 = vsel %vm120, %v680, 0
    %1242 = vmatprep.subr.mxu0 0.0
    %1243 = vmatpush1.xpose.msra.mxu0 0.0
    %1244 = vmatprep.subr.mxu0 0.0
    %1245 = vmatpush1.xpose.msra.mxu0 0.0
    %1246 = vmatprep.subr.mxu0 0.0
    %1247 = vmatpush1.xpose.msra.mxu0 0.0
    %1248 = vmatprep.subr.mxu0 0.0
    %1249 = vmatpush1.xpose.msra.mxu0 0.0
    %1250 = vmatprep.subr.mxu0 0.0
    %1251 = vmatpush1.xpose.msra.mxu0 0.0
    %1252 = vmatprep.subr.mxu0 0.0
    %1253 = vmatpush1.xpose.msra.mxu0 0.0
    %1254 = vmatprep.subr.mxu0 0.0
    %1255 = vmatpush1.xpose.msra.mxu0 0.0
    %1256 = vmatprep.subr.mxu0 0.0
    %1257 = vmatpush1.xpose.msra.mxu0 0.0
    %1258 = vmatprep.subr.mxu0 0.0
    %1259 = vmatpush1.xpose.msra.mxu0 0.0
    %1260 = vmatprep.subr.mxu0 0.0
    %1261 = vmatpush1.xpose.msra.mxu0 0.0
    %1262 = vmatprep.subr.mxu0 0.0
    %1263 = vmatpush1.xpose.msra.mxu0 0.0
    %1264 = vmatprep.subr.mxu0 0.0
    %1265 = vmatpush1.xpose.msra.mxu0 0.0
    %1266 = vmatprep.subr.mxu0 0.0
    %1267 = vmatpush1.xpose.msra.mxu0 %v1240
    %1268 = vmatprep.subr.mxu0 0.0
    %1269 = vmatpush1.xpose.msra.mxu0 %v1237
    %1270 = vmatprep.subr.mxu0 0.0
    %1271 = vmatpush1.xpose.msra.mxu0 %v1234
    %1272 = vmatprep.subr.mxu0 0.0
    %1273 = vmatpush1.xpose.msra.mxu0 %v1231
    %1274 = vmatprep.subr.mxu0 0.0
    %1275 = vmatpush2.xpose.msra.mxu0 0.0
    %1276 = vmatprep.subr.mxu0 0.0
    %1277 = vmatpush2.xpose.msra.mxu0 0.0
    %1278 = vmatprep.subr.mxu0 0.0
    %1279 = vmatpush2.xpose.msra.mxu0 0.0
    %1280 = vmatprep.subr.mxu0 0.0
    %1281 = vmatpush2.xpose.msra.mxu0 0.0
    %1282 = vmatprep.subr.mxu0 0.0
    %1283 = vmatpush2.xpose.msra.mxu0 0.0
    %1284 = vmatprep.subr.mxu0 0.0
    %1285 = vmatpush2.xpose.msra.mxu0 0.0
    %1286 = vmatprep.subr.mxu0 0.0
    %1287 = vmatpush2.xpose.msra.mxu0 0.0
    %1288 = vmatprep.subr.mxu0 0.0
    %1289 = vmatpush2.xpose.msra.mxu0 0.0
    %1290 = vmatprep.subr.mxu0 0.0
    %1291 = vmatpush2.xpose.msra.mxu0 0.0
    %1292 = vmatprep.subr.mxu0 0.0
    %1293 = vmatpush2.xpose.msra.mxu0 0.0
    %1294 = vmatprep.subr.mxu0 0.0
    %1295 = vmatpush2.xpose.msra.mxu0 0.0
    %1296 = vmatprep.subr.mxu0 0.0
    %1297 = vmatpush2.xpose.msra.mxu0 0.0
    %1298 = vmatprep.subr.mxu0 0.0
    %1299 = vmatpush2.xpose.msra.mxu0 0.0
    %1300 = vmatprep.subr.mxu0 0.0
    %1301 = vmatpush2.xpose.msra.mxu0 0.0
    %1302 = vmatprep.subr.mxu0 0.0
    %1303 = vmatpush2.xpose.msra.mxu0 0.0
    %1304 = vmatprep.subr.mxu0 0.0
    %1305 = vmatpush2.xpose.msra.mxu0 0.0
    %1306 = vmatprep.mubr.f32.mxu0 0.0
    %1307 = vmatmul.mubr.f32.gmra.mxu0 %v1228
    %v1308 = vpop.f32.mrf.mxu0
    %v1309 = vadd.f32 0.0, %v1308
    %v1310 = vpop.f32.mrf.mxu0
    %1311 = vdwg.mxu0
    %v1313 = vsel %vm120, %v247, 0
    %v1316 = vsel %vm120, %v681, 0
    %v1319 = vsel %vm120, %v682, 0
    %v1322 = vsel %vm120, %v683, 0
    %v1325 = vsel %vm120, %v684, 0
    %1327 = vmatprep.subr.mxu0 0.0
    %1328 = vmatpush1.xpose.msra.mxu0 0.0
    %1329 = vmatprep.subr.mxu0 0.0
    %1330 = vmatpush1.xpose.msra.mxu0 0.0
    %1331 = vmatprep.subr.mxu0 0.0
    %1332 = vmatpush1.xpose.msra.mxu0 0.0
    %1333 = vmatprep.subr.mxu0 0.0
    %1334 = vmatpush1.xpose.msra.mxu0 0.0
    %1335 = vmatprep.subr.mxu0 0.0
    %1336 = vmatpush1.xpose.msra.mxu0 0.0
    %1337 = vmatprep.subr.mxu0 0.0
    %1338 = vmatpush1.xpose.msra.mxu0 0.0
    %1339 = vmatprep.subr.mxu0 0.0
    %1340 = vmatpush1.xpose.msra.mxu0 0.0
    %1341 = vmatprep.subr.mxu0 0.0
    %1342 = vmatpush1.xpose.msra.mxu0 0.0
    %1343 = vmatprep.subr.mxu0 0.0
    %1344 = vmatpush1.xpose.msra.mxu0 0.0
    %1345 = vmatprep.subr.mxu0 0.0
    %1346 = vmatpush1.xpose.msra.mxu0 0.0
    %1347 = vmatprep.subr.mxu0 0.0
    %1348 = vmatpush1.xpose.msra.mxu0 0.0
    %1349 = vmatprep.subr.mxu0 0.0
    %1350 = vmatpush1.xpose.msra.mxu0 0.0
    %1351 = vmatprep.subr.mxu0 0.0
    %1352 = vmatpush1.xpose.msra.mxu0 %v1325
    %1353 = vmatprep.subr.mxu0 0.0
    %1354 = vmatpush1.xpose.msra.mxu0 %v1322
    %1355 = vmatprep.subr.mxu0 0.0
    %1356 = vmatpush1.xpose.msra.mxu0 %v1319
    %1357 = vmatprep.subr.mxu0 0.0
    %1358 = vmatpush1.xpose.msra.mxu0 %v1316
    %1359 = vmatprep.subr.mxu0 0.0
    %1360 = vmatpush2.xpose.msra.mxu0 0.0
    %1361 = vmatprep.subr.mxu0 0.0
    %1362 = vmatpush2.xpose.msra.mxu0 0.0
    %1363 = vmatprep.subr.mxu0 0.0
    %1364 = vmatpush2.xpose.msra.mxu0 0.0
    %1365 = vmatprep.subr.mxu0 0.0
    %1366 = vmatpush2.xpose.msra.mxu0 0.0
    %1367 = vmatprep.subr.mxu0 0.0
    %1368 = vmatpush2.xpose.msra.mxu0 0.0
    %1369 = vmatprep.subr.mxu0 0.0
    %1370 = vmatpush2.xpose.msra.mxu0 0.0
    %1371 = vmatprep.subr.mxu0 0.0
    %1372 = vmatpush2.xpose.msra.mxu0 0.0
    %1373 = vmatprep.subr.mxu0 0.0
    %1374 = vmatpush2.xpose.msra.mxu0 0.0
    %1375 = vmatprep.subr.mxu0 0.0
    %1376 = vmatpush2.xpose.msra.mxu0 0.0
    %1377 = vmatprep.subr.mxu0 0.0
    %1378 = vmatpush2.xpose.msra.mxu0 0.0
    %1379 = vmatprep.subr.mxu0 0.0
    %1380 = vmatpush2.xpose.msra.mxu0 0.0
    %1381 = vmatprep.subr.mxu0 0.0
    %1382 = vmatpush2.xpose.msra.mxu0 0.0
    %1383 = vmatprep.subr.mxu0 0.0
    %1384 = vmatpush2.xpose.msra.mxu0 0.0
    %1385 = vmatprep.subr.mxu0 0.0
    %1386 = vmatpush2.xpose.msra.mxu0 0.0
    %1387 = vmatprep.subr.mxu0 0.0
    %1388 = vmatpush2.xpose.msra.mxu0 0.0
    %1389 = vmatprep.subr.mxu0 0.0
    %1390 = vmatpush2.xpose.msra.mxu0 0.0
    %1391 = vmatprep.mubr.f32.mxu0 0.0
    %1392 = vmatmul.mubr.f32.gmra.mxu0 %v1313
    %v1393 = vpop.f32.mrf.mxu0
    %v1394 = vadd.f32 0.0, %v1393
    %v1395 = vpop.f32.mrf.mxu0
    %1396 = vdwg.mxu0
    %v1397 = vsel %vm120, %v799, -inf
    %1398 = vmax.xlane.f32.xlu0 %v1397
    %v1399 = vpop.xlane.xlu0 %1398
    %v1400 = vsel %vm120, %v884, -inf
    %1401 = vmax.xlane.f32.xlu0 %v1400
    %v1402 = vpop.xlane.xlu0 %1401
    %v1403 = vsel %vm120, %v969, -inf
    %1404 = vmax.xlane.f32.xlu0 %v1403
    %v1405 = vpop.xlane.xlu0 %1404
    %v1406 = vsel %vm120, %v1054, -inf
    %1407 = vmax.xlane.f32.xlu0 %v1406
    %v1408 = vpop.xlane.xlu0 %1407
    %v1409 = vsel %vm120, %v1139, -inf
    %1410 = vmax.xlane.f32.xlu0 %v1409
    %v1411 = vpop.xlane.xlu0 %1410
    %v1412 = vsel %vm120, %v1224, -inf
    %1413 = vmax.xlane.f32.xlu0 %v1412
    %v1414 = vpop.xlane.xlu0 %1413
    %v1415 = vsel %vm120, %v1309, -inf
    %1416 = vmax.xlane.f32.xlu0 %v1415
    %v1417 = vpop.xlane.xlu0 %1416
    %v1418 = vsel %vm120, %v1394, -inf
    %1419 = vmax.xlane.f32.xlu0 %v1418
    %v1420 = vpop.xlane.xlu0 %1419
    %v1421 = vsub.f32 %v799, %v1399
    %v1422 = vsub.f32 %v884, %v1402
    %v1423 = vsub.f32 %v969, %v1405
    %v1424 = vsub.f32 %v1054, %v1408
    %v1425 = vsub.f32 %v1139, %v1411
    %v1426 = vsub.f32 %v1224, %v1414
    %v1427 = vsub.f32 %v1309, %v1417
    %v1428 = vsub.f32 %v1394, %v1420
    %v1429 = vmul.f32 %v1421, 1.442695
    %v1430 = vpow.pop %v1429
    %v1431 = vmul.f32 %v1422, 1.442695
    %v1432 = vpow.pop %v1431
    %v1433 = vmul.f32 %v1423, 1.442695
    %v1434 = vpow.pop %v1433
    %v1435 = vmul.f32 %v1424, 1.442695
    %v1436 = vpow.pop %v1435
    %v1437 = vmul.f32 %v1425, 1.442695
    %v1438 = vpow.pop %v1437
    %v1439 = vmul.f32 %v1426, 1.442695
    %v1440 = vpow.pop %v1439
    %v1441 = vmul.f32 %v1427, 1.442695
    %v1442 = vpow.pop %v1441
    %v1443 = vmul.f32 %v1428, 1.442695
    %v1444 = vpow.pop %v1443
    %v1446 = vsel %vm120, %v1430, 0
    %v1449 = vsel %vm120, %v1432, 0
    %v1452 = vsel %vm120, %v1434, 0
    %v1455 = vsel %vm120, %v1436, 0
    %v1458 = vsel %vm120, %v1438, 0
    %v1461 = vsel %vm120, %v1440, 0
    %v1464 = vsel %vm120, %v1442, 0
    %v1467 = vsel %vm120, %v1444, 0
    %1469 = vmatprep.subr.mxu0 0.0
    %1470 = vmatpush1.msra.mxu0 0.0
    %1471 = vmatprep.subr.mxu0 0.0
    %1472 = vmatpush1.msra.mxu0 0.0
    %1473 = vmatprep.subr.mxu0 0.0
    %1474 = vmatpush1.msra.mxu0 0.0
    %1475 = vmatprep.subr.mxu0 0.0
    %1476 = vmatpush1.msra.mxu0 0.0
    %1477 = vmatprep.subr.mxu0 0.0
    %1478 = vmatpush1.msra.mxu0 0.0
    %1479 = vmatprep.subr.mxu0 0.0
    %1480 = vmatpush1.msra.mxu0 0.0
    %1481 = vmatprep.subr.mxu0 0.0
    %1482 = vmatpush1.msra.mxu0 0.0
    %1483 = vmatprep.subr.mxu0 0.0
    %1484 = vmatpush1.msra.mxu0 0.0
    %1485 = vmatprep.subr.mxu0 0.0
    %1486 = vmatpush1.msra.mxu0 0.0
    %1487 = vmatprep.subr.mxu0 0.0
    %1488 = vmatpush1.msra.mxu0 0.0
    %1489 = vmatprep.subr.mxu0 0.0
    %1490 = vmatpush1.msra.mxu0 0.0
    %1491 = vmatprep.subr.mxu0 0.0
    %1492 = vmatpush1.msra.mxu0 0.0
    %1493 = vmatprep.subr.mxu0 0.0
    %1494 = vmatpush1.msra.mxu0 %v652
    %1495 = vmatprep.subr.mxu0 0.0
    %1496 = vmatpush1.msra.mxu0 %v651
    %1497 = vmatprep.subr.mxu0 0.0
    %1498 = vmatpush1.msra.mxu0 %v650
    %1499 = vmatprep.subr.mxu0 0.0
    %1500 = vmatpush1.msra.mxu0 %v649
    %1501 = vmatprep.subr.mxu0 0.0
    %1502 = vmatpush2.msra.mxu0 0.0
    %1503 = vmatprep.subr.mxu0 0.0
    %1504 = vmatpush2.msra.mxu0 0.0
    %1505 = vmatprep.subr.mxu0 0.0
    %1506 = vmatpush2.msra.mxu0 0.0
    %1507 = vmatprep.subr.mxu0 0.0
    %1508 = vmatpush2.msra.mxu0 0.0
    %1509 = vmatprep.subr.mxu0 0.0
    %1510 = vmatpush2.msra.mxu0 0.0
    %1511 = vmatprep.subr.mxu0 0.0
    %1512 = vmatpush2.msra.mxu0 0.0
    %1513 = vmatprep.subr.mxu0 0.0
    %1514 = vmatpush2.msra.mxu0 0.0
    %1515 = vmatprep.subr.mxu0 0.0
    %1516 = vmatpush2.msra.mxu0 0.0
    %1517 = vmatprep.subr.mxu0 0.0
    %1518 = vmatpush2.msra.mxu0 0.0
    %1519 = vmatprep.subr.mxu0 0.0
    %1520 = vmatpush2.msra.mxu0 0.0
    %1521 = vmatprep.subr.mxu0 0.0
    %1522 = vmatpush2.msra.mxu0 0.0
    %1523 = vmatprep.subr.mxu0 0.0
    %1524 = vmatpush2.msra.mxu0 0.0
    %1525 = vmatprep.subr.mxu0 0.0
    %1526 = vmatpush2.msra.mxu0 0.0
    %1527 = vmatprep.subr.mxu0 0.0
    %1528 = vmatpush2.msra.mxu0 0.0
    %1529 = vmatprep.subr.mxu0 0.0
    %1530 = vmatpush2.msra.mxu0 0.0
    %1531 = vmatprep.subr.mxu0 0.0
    %1532 = vmatpush2.msra.mxu0 0.0
    %1533 = vmatprep.mubr.f32.mxu0 0.0
    %1534 = vmatmul.mubr.f32.gmra.mxu0 %v1446
    %v1535 = vpop.f32.mrf.mxu0
    %v1536 = vadd.f32 0.0, %v1535
    %v1537 = vpop.f32.mrf.mxu0
    %1538 = vmatprep.mubr.f32.mxu0 0.0
    %1539 = vmatmul.mubr.f32.gmra.mxu0 %v1449
    %v1540 = vpop.f32.mrf.mxu0
    %v1541 = vadd.f32 0.0, %v1540
    %v1542 = vpop.f32.mrf.mxu0
    %1543 = vmatprep.mubr.f32.mxu0 0.0
    %1544 = vmatmul.mubr.f32.gmra.mxu0 %v1452
    %v1545 = vpop.f32.mrf.mxu0
    %v1546 = vadd.f32 0.0, %v1545
    %v1547 = vpop.f32.mrf.mxu0
    %1548 = vmatprep.mubr.f32.mxu0 0.0
    %1549 = vmatmul.mubr.f32.gmra.mxu0 %v1455
    %v1550 = vpop.f32.mrf.mxu0
    %v1551 = vadd.f32 0.0, %v1550
    %v1552 = vpop.f32.mrf.mxu0
    %1553 = vmatprep.mubr.f32.mxu0 0.0
    %1554 = vmatmul.mubr.f32.gmra.mxu0 %v1458
    %v1555 = vpop.f32.mrf.mxu0
    %v1556 = vadd.f32 0.0, %v1555
    %v1557 = vpop.f32.mrf.mxu0
    %1558 = vmatprep.mubr.f32.mxu0 0.0
    %1559 = vmatmul.mubr.f32.gmra.mxu0 %v1461
    %v1560 = vpop.f32.mrf.mxu0
    %v1561 = vadd.f32 0.0, %v1560
    %v1562 = vpop.f32.mrf.mxu0
    %1563 = vmatprep.mubr.f32.mxu0 0.0
    %1564 = vmatmul.mubr.f32.gmra.mxu0 %v1464
    %v1565 = vpop.f32.mrf.mxu0
    %v1566 = vadd.f32 0.0, %v1565
    %v1567 = vpop.f32.mrf.mxu0
    %1568 = vmatprep.mubr.f32.mxu0 0.0
    %1569 = vmatmul.mubr.f32.gmra.mxu0 %v1467
    %v1570 = vpop.f32.mrf.mxu0
    %v1571 = vadd.f32 0.0, %v1570
    %v1572 = vpop.f32.mrf.mxu0
    %1573 = vdwg.mxu0
    %v1574 = vmax.f32 %v1536, 1e-30
    %v1575 = vmax.f32 %v1541, 1e-30
    %v1576 = vmax.f32 %v1546, 1e-30
    %v1577 = vmax.f32 %v1551, 1e-30
    %v1578 = vmax.f32 %v1556, 1e-30
    %v1579 = vmax.f32 %v1561, 1e-30
    %v1580 = vmax.f32 %v1566, 1e-30
    %v1581 = vmax.f32 %v1571, 1e-30
    %v1582 = vrcp.pop %v1574
    %v1583 = vrcp.pop %v1575
    %v1584 = vrcp.pop %v1576
    %v1585 = vrcp.pop %v1577
    %v1586 = vrcp.pop %v1578
    %v1587 = vrcp.pop %v1579
    %v1588 = vrcp.pop %v1580
    %v1589 = vrcp.pop %v1581
    %v1590 = vmul.f32 %v1430, %v1582
    %v1591 = vmul.f32 %v1432, %v1583
    %v1592 = vmul.f32 %v1434, %v1584
    %v1593 = vmul.f32 %v1436, %v1585
    %v1594 = vmul.f32 %v1438, %v1586
    %v1595 = vmul.f32 %v1440, %v1587
    %v1596 = vmul.f32 %v1442, %v1588
    %v1597 = vmul.f32 %v1444, %v1589
    %v1599 = vsel %vm120, %v1590, 0
    %1601 = vmatprep.subr.mxu0 0.0
    %1602 = vmatpush1.msra.mxu0 0.0
    %1603 = vmatprep.subr.mxu0 0.0
    %1604 = vmatpush1.msra.mxu0 0.0
    %1605 = vmatprep.subr.mxu0 0.0
    %1606 = vmatpush1.msra.mxu0 0.0
    %1607 = vmatprep.subr.mxu0 0.0
    %1608 = vmatpush1.msra.mxu0 0.0
    %1609 = vmatprep.subr.mxu0 0.0
    %1610 = vmatpush1.msra.mxu0 0.0
    %1611 = vmatprep.subr.mxu0 0.0
    %1612 = vmatpush1.msra.mxu0 0.0
    %1613 = vmatprep.subr.mxu0 0.0
    %1614 = vmatpush1.msra.mxu0 0.0
    %1615 = vmatprep.subr.mxu0 0.0
    %1616 = vmatpush1.msra.mxu0 0.0
    %1617 = vmatprep.subr.mxu0 0.0
    %1618 = vmatpush1.msra.mxu0 0.0
    %1619 = vmatprep.subr.mxu0 0.0
    %1620 = vmatpush1.msra.mxu0 0.0
    %1621 = vmatprep.subr.mxu0 0.0
    %1622 = vmatpush1.msra.mxu0 0.0
    %1623 = vmatprep.subr.mxu0 0.0
    %1624 = vmatpush1.msra.mxu0 0.0
    %1625 = vmatprep.subr.mxu0 0.0
    %1626 = vmatpush1.msra.mxu0 %v688
    %1627 = vmatprep.subr.mxu0 0.0
    %1628 = vmatpush1.msra.mxu0 %v687
    %1629 = vmatprep.subr.mxu0 0.0
    %1630 = vmatpush1.msra.mxu0 %v686
    %1631 = vmatprep.subr.mxu0 0.0
    %1632 = vmatpush1.msra.mxu0 %v685
    %1633 = vmatprep.subr.mxu0 0.0
    %1634 = vmatpush2.msra.mxu0 0.0
    %1635 = vmatprep.subr.mxu0 0.0
    %1636 = vmatpush2.msra.mxu0 0.0
    %1637 = vmatprep.subr.mxu0 0.0
    %1638 = vmatpush2.msra.mxu0 0.0
    %1639 = vmatprep.subr.mxu0 0.0
    %1640 = vmatpush2.msra.mxu0 0.0
    %1641 = vmatprep.subr.mxu0 0.0
    %1642 = vmatpush2.msra.mxu0 0.0
    %1643 = vmatprep.subr.mxu0 0.0
    %1644 = vmatpush2.msra.mxu0 0.0
    %1645 = vmatprep.subr.mxu0 0.0
    %1646 = vmatpush2.msra.mxu0 0.0
    %1647 = vmatprep.subr.mxu0 0.0
    %1648 = vmatpush2.msra.mxu0 0.0
    %1649 = vmatprep.subr.mxu0 0.0
    %1650 = vmatpush2.msra.mxu0 0.0
    %1651 = vmatprep.subr.mxu0 0.0
    %1652 = vmatpush2.msra.mxu0 0.0
    %1653 = vmatprep.subr.mxu0 0.0
    %1654 = vmatpush2.msra.mxu0 0.0
    %1655 = vmatprep.subr.mxu0 0.0
    %1656 = vmatpush2.msra.mxu0 0.0
    %1657 = vmatprep.subr.mxu0 0.0
    %1658 = vmatpush2.msra.mxu0 0.0
    %1659 = vmatprep.subr.mxu0 0.0
    %1660 = vmatpush2.msra.mxu0 0.0
    %1661 = vmatprep.subr.mxu0 0.0
    %1662 = vmatpush2.msra.mxu0 0.0
    %1663 = vmatprep.subr.mxu0 0.0
    %1664 = vmatpush2.msra.mxu0 0.0
    %1665 = vmatprep.mubr.f32.mxu0 0.0
    %1666 = vmatmul.mubr.f32.gmra.mxu0 %v1599
    %v1667 = vpop.f32.mrf.mxu0
    %v1668 = vadd.f32 0.0, %v1667
    %v1669 = vpop.f32.mrf.mxu0
    %1670 = vdwg.mxu0
    %v1672 = vsel %vm120, %v1591, 0
    %1674 = vmatprep.subr.mxu0 0.0
    %1675 = vmatpush1.msra.mxu0 0.0
    %1676 = vmatprep.subr.mxu0 0.0
    %1677 = vmatpush1.msra.mxu0 0.0
    %1678 = vmatprep.subr.mxu0 0.0
    %1679 = vmatpush1.msra.mxu0 0.0
    %1680 = vmatprep.subr.mxu0 0.0
    %1681 = vmatpush1.msra.mxu0 0.0
    %1682 = vmatprep.subr.mxu0 0.0
    %1683 = vmatpush1.msra.mxu0 0.0
    %1684 = vmatprep.subr.mxu0 0.0
    %1685 = vmatpush1.msra.mxu0 0.0
    %1686 = vmatprep.subr.mxu0 0.0
    %1687 = vmatpush1.msra.mxu0 0.0
    %1688 = vmatprep.subr.mxu0 0.0
    %1689 = vmatpush1.msra.mxu0 0.0
    %1690 = vmatprep.subr.mxu0 0.0
    %1691 = vmatpush1.msra.mxu0 0.0
    %1692 = vmatprep.subr.mxu0 0.0
    %1693 = vmatpush1.msra.mxu0 0.0
    %1694 = vmatprep.subr.mxu0 0.0
    %1695 = vmatpush1.msra.mxu0 0.0
    %1696 = vmatprep.subr.mxu0 0.0
    %1697 = vmatpush1.msra.mxu0 0.0
    %1698 = vmatprep.subr.mxu0 0.0
    %1699 = vmatpush1.msra.mxu0 %v692
    %1700 = vmatprep.subr.mxu0 0.0
    %1701 = vmatpush1.msra.mxu0 %v691
    %1702 = vmatprep.subr.mxu0 0.0
    %1703 = vmatpush1.msra.mxu0 %v690
    %1704 = vmatprep.subr.mxu0 0.0
    %1705 = vmatpush1.msra.mxu0 %v689
    %1706 = vmatprep.subr.mxu0 0.0
    %1707 = vmatpush2.msra.mxu0 0.0
    %1708 = vmatprep.subr.mxu0 0.0
    %1709 = vmatpush2.msra.mxu0 0.0
    %1710 = vmatprep.subr.mxu0 0.0
    %1711 = vmatpush2.msra.mxu0 0.0
    %1712 = vmatprep.subr.mxu0 0.0
    %1713 = vmatpush2.msra.mxu0 0.0
    %1714 = vmatprep.subr.mxu0 0.0
    %1715 = vmatpush2.msra.mxu0 0.0
    %1716 = vmatprep.subr.mxu0 0.0
    %1717 = vmatpush2.msra.mxu0 0.0
    %1718 = vmatprep.subr.mxu0 0.0
    %1719 = vmatpush2.msra.mxu0 0.0
    %1720 = vmatprep.subr.mxu0 0.0
    %1721 = vmatpush2.msra.mxu0 0.0
    %1722 = vmatprep.subr.mxu0 0.0
    %1723 = vmatpush2.msra.mxu0 0.0
    %1724 = vmatprep.subr.mxu0 0.0
    %1725 = vmatpush2.msra.mxu0 0.0
    %1726 = vmatprep.subr.mxu0 0.0
    %1727 = vmatpush2.msra.mxu0 0.0
    %1728 = vmatprep.subr.mxu0 0.0
    %1729 = vmatpush2.msra.mxu0 0.0
    %1730 = vmatprep.subr.mxu0 0.0
    %1731 = vmatpush2.msra.mxu0 0.0
    %1732 = vmatprep.subr.mxu0 0.0
    %1733 = vmatpush2.msra.mxu0 0.0
    %1734 = vmatprep.subr.mxu0 0.0
    %1735 = vmatpush2.msra.mxu0 0.0
    %1736 = vmatprep.subr.mxu0 0.0
    %1737 = vmatpush2.msra.mxu0 0.0
    %1738 = vmatprep.mubr.f32.mxu0 0.0
    %1739 = vmatmul.mubr.f32.gmra.mxu0 %v1672
    %v1740 = vpop.f32.mrf.mxu0
    %v1741 = vadd.f32 0.0, %v1740
    %v1742 = vpop.f32.mrf.mxu0
    %1743 = vdwg.mxu0
    %v1745 = vsel %vm120, %v1592, 0
    %1747 = vmatprep.subr.mxu0 0.0
    %1748 = vmatpush1.msra.mxu0 0.0
    %1749 = vmatprep.subr.mxu0 0.0
    %1750 = vmatpush1.msra.mxu0 0.0
    %1751 = vmatprep.subr.mxu0 0.0
    %1752 = vmatpush1.msra.mxu0 0.0
    %1753 = vmatprep.subr.mxu0 0.0
    %1754 = vmatpush1.msra.mxu0 0.0
    %1755 = vmatprep.subr.mxu0 0.0
    %1756 = vmatpush1.msra.mxu0 0.0
    %1757 = vmatprep.subr.mxu0 0.0
    %1758 = vmatpush1.msra.mxu0 0.0
    %1759 = vmatprep.subr.mxu0 0.0
    %1760 = vmatpush1.msra.mxu0 0.0
    %1761 = vmatprep.subr.mxu0 0.0
    %1762 = vmatpush1.msra.mxu0 0.0
    %1763 = vmatprep.subr.mxu0 0.0
    %1764 = vmatpush1.msra.mxu0 0.0
    %1765 = vmatprep.subr.mxu0 0.0
    %1766 = vmatpush1.msra.mxu0 0.0
    %1767 = vmatprep.subr.mxu0 0.0
    %1768 = vmatpush1.msra.mxu0 0.0
    %1769 = vmatprep.subr.mxu0 0.0
    %1770 = vmatpush1.msra.mxu0 0.0
    %1771 = vmatprep.subr.mxu0 0.0
    %1772 = vmatpush1.msra.mxu0 %v696
    %1773 = vmatprep.subr.mxu0 0.0
    %1774 = vmatpush1.msra.mxu0 %v695
    %1775 = vmatprep.subr.mxu0 0.0
    %1776 = vmatpush1.msra.mxu0 %v694
    %1777 = vmatprep.subr.mxu0 0.0
    %1778 = vmatpush1.msra.mxu0 %v693
    %1779 = vmatprep.subr.mxu0 0.0
    %1780 = vmatpush2.msra.mxu0 0.0
    %1781 = vmatprep.subr.mxu0 0.0
    %1782 = vmatpush2.msra.mxu0 0.0
    %1783 = vmatprep.subr.mxu0 0.0
    %1784 = vmatpush2.msra.mxu0 0.0
    %1785 = vmatprep.subr.mxu0 0.0
    %1786 = vmatpush2.msra.mxu0 0.0
    %1787 = vmatprep.subr.mxu0 0.0
    %1788 = vmatpush2.msra.mxu0 0.0
    %1789 = vmatprep.subr.mxu0 0.0
    %1790 = vmatpush2.msra.mxu0 0.0
    %1791 = vmatprep.subr.mxu0 0.0
    %1792 = vmatpush2.msra.mxu0 0.0
    %1793 = vmatprep.subr.mxu0 0.0
    %1794 = vmatpush2.msra.mxu0 0.0
    %1795 = vmatprep.subr.mxu0 0.0
    %1796 = vmatpush2.msra.mxu0 0.0
    %1797 = vmatprep.subr.mxu0 0.0
    %1798 = vmatpush2.msra.mxu0 0.0
    %1799 = vmatprep.subr.mxu0 0.0
    %1800 = vmatpush2.msra.mxu0 0.0
    %1801 = vmatprep.subr.mxu0 0.0
    %1802 = vmatpush2.msra.mxu0 0.0
    %1803 = vmatprep.subr.mxu0 0.0
    %1804 = vmatpush2.msra.mxu0 0.0
    %1805 = vmatprep.subr.mxu0 0.0
    %1806 = vmatpush2.msra.mxu0 0.0
    %1807 = vmatprep.subr.mxu0 0.0
    %1808 = vmatpush2.msra.mxu0 0.0
    %1809 = vmatprep.subr.mxu0 0.0
    %1810 = vmatpush2.msra.mxu0 0.0
    %1811 = vmatprep.mubr.f32.mxu0 0.0
    %1812 = vmatmul.mubr.f32.gmra.mxu0 %v1745
    %v1813 = vpop.f32.mrf.mxu0
    %v1814 = vadd.f32 0.0, %v1813
    %v1815 = vpop.f32.mrf.mxu0
    %1816 = vdwg.mxu0
    %v1818 = vsel %vm120, %v1593, 0
    %1820 = vmatprep.subr.mxu0 0.0
    %1821 = vmatpush1.msra.mxu0 0.0
    %1822 = vmatprep.subr.mxu0 0.0
    %1823 = vmatpush1.msra.mxu0 0.0
    %1824 = vmatprep.subr.mxu0 0.0
    %1825 = vmatpush1.msra.mxu0 0.0
    %1826 = vmatprep.subr.mxu0 0.0
    %1827 = vmatpush1.msra.mxu0 0.0
    %1828 = vmatprep.subr.mxu0 0.0
    %1829 = vmatpush1.msra.mxu0 0.0
    %1830 = vmatprep.subr.mxu0 0.0
    %1831 = vmatpush1.msra.mxu0 0.0
    %1832 = vmatprep.subr.mxu0 0.0
    %1833 = vmatpush1.msra.mxu0 0.0
    %1834 = vmatprep.subr.mxu0 0.0
    %1835 = vmatpush1.msra.mxu0 0.0
    %1836 = vmatprep.subr.mxu0 0.0
    %1837 = vmatpush1.msra.mxu0 0.0
    %1838 = vmatprep.subr.mxu0 0.0
    %1839 = vmatpush1.msra.mxu0 0.0
    %1840 = vmatprep.subr.mxu0 0.0
    %1841 = vmatpush1.msra.mxu0 0.0
    %1842 = vmatprep.subr.mxu0 0.0
    %1843 = vmatpush1.msra.mxu0 0.0
    %1844 = vmatprep.subr.mxu0 0.0
    %1845 = vmatpush1.msra.mxu0 %v700
    %1846 = vmatprep.subr.mxu0 0.0
    %1847 = vmatpush1.msra.mxu0 %v699
    %1848 = vmatprep.subr.mxu0 0.0
    %1849 = vmatpush1.msra.mxu0 %v698
    %1850 = vmatprep.subr.mxu0 0.0
    %1851 = vmatpush1.msra.mxu0 %v697
    %1852 = vmatprep.subr.mxu0 0.0
    %1853 = vmatpush2.msra.mxu0 0.0
    %1854 = vmatprep.subr.mxu0 0.0
    %1855 = vmatpush2.msra.mxu0 0.0
    %1856 = vmatprep.subr.mxu0 0.0
    %1857 = vmatpush2.msra.mxu0 0.0
    %1858 = vmatprep.subr.mxu0 0.0
    %1859 = vmatpush2.msra.mxu0 0.0
    %1860 = vmatprep.subr.mxu0 0.0
    %1861 = vmatpush2.msra.mxu0 0.0
    %1862 = vmatprep.subr.mxu0 0.0
    %1863 = vmatpush2.msra.mxu0 0.0
    %1864 = vmatprep.subr.mxu0 0.0
    %1865 = vmatpush2.msra.mxu0 0.0
    %1866 = vmatprep.subr.mxu0 0.0
    %1867 = vmatpush2.msra.mxu0 0.0
    %1868 = vmatprep.subr.mxu0 0.0
    %1869 = vmatpush2.msra.mxu0 0.0
    %1870 = vmatprep.subr.mxu0 0.0
    %1871 = vmatpush2.msra.mxu0 0.0
    %1872 = vmatprep.subr.mxu0 0.0
    %1873 = vmatpush2.msra.mxu0 0.0
    %1874 = vmatprep.subr.mxu0 0.0
    %1875 = vmatpush2.msra.mxu0 0.0
    %1876 = vmatprep.subr.mxu0 0.0
    %1877 = vmatpush2.msra.mxu0 0.0
    %1878 = vmatprep.subr.mxu0 0.0
    %1879 = vmatpush2.msra.mxu0 0.0
    %1880 = vmatprep.subr.mxu0 0.0
    %1881 = vmatpush2.msra.mxu0 0.0
    %1882 = vmatprep.subr.mxu0 0.0
    %1883 = vmatpush2.msra.mxu0 0.0
    %1884 = vmatprep.mubr.f32.mxu0 0.0
    %1885 = vmatmul.mubr.f32.gmra.mxu0 %v1818
    %v1886 = vpop.f32.mrf.mxu0
    %v1887 = vadd.f32 0.0, %v1886
    %v1888 = vpop.f32.mrf.mxu0
    %1889 = vdwg.mxu0
    %v1891 = vsel %vm120, %v1594, 0
    %1893 = vmatprep.subr.mxu0 0.0
    %1894 = vmatpush1.msra.mxu0 0.0
    %1895 = vmatprep.subr.mxu0 0.0
    %1896 = vmatpush1.msra.mxu0 0.0
    %1897 = vmatprep.subr.mxu0 0.0
    %1898 = vmatpush1.msra.mxu0 0.0
    %1899 = vmatprep.subr.mxu0 0.0
    %1900 = vmatpush1.msra.mxu0 0.0
    %1901 = vmatprep.subr.mxu0 0.0
    %1902 = vmatpush1.msra.mxu0 0.0
    %1903 = vmatprep.subr.mxu0 0.0
    %1904 = vmatpush1.msra.mxu0 0.0
    %1905 = vmatprep.subr.mxu0 0.0
    %1906 = vmatpush1.msra.mxu0 0.0
    %1907 = vmatprep.subr.mxu0 0.0
    %1908 = vmatpush1.msra.mxu0 0.0
    %1909 = vmatprep.subr.mxu0 0.0
    %1910 = vmatpush1.msra.mxu0 0.0
    %1911 = vmatprep.subr.mxu0 0.0
    %1912 = vmatpush1.msra.mxu0 0.0
    %1913 = vmatprep.subr.mxu0 0.0
    %1914 = vmatpush1.msra.mxu0 0.0
    %1915 = vmatprep.subr.mxu0 0.0
    %1916 = vmatpush1.msra.mxu0 0.0
    %1917 = vmatprep.subr.mxu0 0.0
    %1918 = vmatpush1.msra.mxu0 %v704
    %1919 = vmatprep.subr.mxu0 0.0
    %1920 = vmatpush1.msra.mxu0 %v703
    %1921 = vmatprep.subr.mxu0 0.0
    %1922 = vmatpush1.msra.mxu0 %v702
    %1923 = vmatprep.subr.mxu0 0.0
    %1924 = vmatpush1.msra.mxu0 %v701
    %1925 = vmatprep.subr.mxu0 0.0
    %1926 = vmatpush2.msra.mxu0 0.0
    %1927 = vmatprep.subr.mxu0 0.0
    %1928 = vmatpush2.msra.mxu0 0.0
    %1929 = vmatprep.subr.mxu0 0.0
    %1930 = vmatpush2.msra.mxu0 0.0
    %1931 = vmatprep.subr.mxu0 0.0
    %1932 = vmatpush2.msra.mxu0 0.0
    %1933 = vmatprep.subr.mxu0 0.0
    %1934 = vmatpush2.msra.mxu0 0.0
    %1935 = vmatprep.subr.mxu0 0.0
    %1936 = vmatpush2.msra.mxu0 0.0
    %1937 = vmatprep.subr.mxu0 0.0
    %1938 = vmatpush2.msra.mxu0 0.0
    %1939 = vmatprep.subr.mxu0 0.0
    %1940 = vmatpush2.msra.mxu0 0.0
    %1941 = vmatprep.subr.mxu0 0.0
    %1942 = vmatpush2.msra.mxu0 0.0
    %1943 = vmatprep.subr.mxu0 0.0
    %1944 = vmatpush2.msra.mxu0 0.0
    %1945 = vmatprep.subr.mxu0 0.0
    %1946 = vmatpush2.msra.mxu0 0.0
    %1947 = vmatprep.subr.mxu0 0.0
    %1948 = vmatpush2.msra.mxu0 0.0
    %1949 = vmatprep.subr.mxu0 0.0
    %1950 = vmatpush2.msra.mxu0 0.0
    %1951 = vmatprep.subr.mxu0 0.0
    %1952 = vmatpush2.msra.mxu0 0.0
    %1953 = vmatprep.subr.mxu0 0.0
    %1954 = vmatpush2.msra.mxu0 0.0
    %1955 = vmatprep.subr.mxu0 0.0
    %1956 = vmatpush2.msra.mxu0 0.0
    %1957 = vmatprep.mubr.f32.mxu0 0.0
    %1958 = vmatmul.mubr.f32.gmra.mxu0 %v1891
    %v1959 = vpop.f32.mrf.mxu0
    %v1960 = vadd.f32 0.0, %v1959
    %v1961 = vpop.f32.mrf.mxu0
    %1962 = vdwg.mxu0
    %v1964 = vsel %vm120, %v1595, 0
    %1966 = vmatprep.subr.mxu0 0.0
    %1967 = vmatpush1.msra.mxu0 0.0
    %1968 = vmatprep.subr.mxu0 0.0
    %1969 = vmatpush1.msra.mxu0 0.0
    %1970 = vmatprep.subr.mxu0 0.0
    %1971 = vmatpush1.msra.mxu0 0.0
    %1972 = vmatprep.subr.mxu0 0.0
    %1973 = vmatpush1.msra.mxu0 0.0
    %1974 = vmatprep.subr.mxu0 0.0
    %1975 = vmatpush1.msra.mxu0 0.0
    %1976 = vmatprep.subr.mxu0 0.0
    %1977 = vmatpush1.msra.mxu0 0.0
    %1978 = vmatprep.subr.mxu0 0.0
    %1979 = vmatpush1.msra.mxu0 0.0
    %1980 = vmatprep.subr.mxu0 0.0
    %1981 = vmatpush1.msra.mxu0 0.0
    %1982 = vmatprep.subr.mxu0 0.0
    %1983 = vmatpush1.msra.mxu0 0.0
    %1984 = vmatprep.subr.mxu0 0.0
    %1985 = vmatpush1.msra.mxu0 0.0
    %1986 = vmatprep.subr.mxu0 0.0
    %1987 = vmatpush1.msra.mxu0 0.0
    %1988 = vmatprep.subr.mxu0 0.0
    %1989 = vmatpush1.msra.mxu0 0.0
    %1990 = vmatprep.subr.mxu0 0.0
    %1991 = vmatpush1.msra.mxu0 %v708
    %1992 = vmatprep.subr.mxu0 0.0
    %1993 = vmatpush1.msra.mxu0 %v707
    %1994 = vmatprep.subr.mxu0 0.0
    %1995 = vmatpush1.msra.mxu0 %v706
    %1996 = vmatprep.subr.mxu0 0.0
    %1997 = vmatpush1.msra.mxu0 %v705
    %1998 = vmatprep.subr.mxu0 0.0
    %1999 = vmatpush2.msra.mxu0 0.0
    %2000 = vmatprep.subr.mxu0 0.0
    %2001 = vmatpush2.msra.mxu0 0.0
    %2002 = vmatprep.subr.mxu0 0.0
    %2003 = vmatpush2.msra.mxu0 0.0
    %2004 = vmatprep.subr.mxu0 0.0
    %2005 = vmatpush2.msra.mxu0 0.0
    %2006 = vmatprep.subr.mxu0 0.0
    %2007 = vmatpush2.msra.mxu0 0.0
    %2008 = vmatprep.subr.mxu0 0.0
    %2009 = vmatpush2.msra.mxu0 0.0
    %2010 = vmatprep.subr.mxu0 0.0
    %2011 = vmatpush2.msra.mxu0 0.0
    %2012 = vmatprep.subr.mxu0 0.0
    %2013 = vmatpush2.msra.mxu0 0.0
    %2014 = vmatprep.subr.mxu0 0.0
    %2015 = vmatpush2.msra.mxu0 0.0
    %2016 = vmatprep.subr.mxu0 0.0
    %2017 = vmatpush2.msra.mxu0 0.0
    %2018 = vmatprep.subr.mxu0 0.0
    %2019 = vmatpush2.msra.mxu0 0.0
    %2020 = vmatprep.subr.mxu0 0.0
    %2021 = vmatpush2.msra.mxu0 0.0
    %2022 = vmatprep.subr.mxu0 0.0
    %2023 = vmatpush2.msra.mxu0 0.0
    %2024 = vmatprep.subr.mxu0 0.0
    %2025 = vmatpush2.msra.mxu0 0.0
    %2026 = vmatprep.subr.mxu0 0.0
    %2027 = vmatpush2.msra.mxu0 0.0
    %2028 = vmatprep.subr.mxu0 0.0
    %2029 = vmatpush2.msra.mxu0 0.0
    %2030 = vmatprep.mubr.f32.mxu0 0.0
    %2031 = vmatmul.mubr.f32.gmra.mxu0 %v1964
    %v2032 = vpop.f32.mrf.mxu0
    %v2033 = vadd.f32 0.0, %v2032
    %v2034 = vpop.f32.mrf.mxu0
    %2035 = vdwg.mxu0
    %v2037 = vsel %vm120, %v1596, 0
    %2039 = vmatprep.subr.mxu0 0.0
    %2040 = vmatpush1.msra.mxu0 0.0
    %2041 = vmatprep.subr.mxu0 0.0
    %2042 = vmatpush1.msra.mxu0 0.0
    %2043 = vmatprep.subr.mxu0 0.0
    %2044 = vmatpush1.msra.mxu0 0.0
    %2045 = vmatprep.subr.mxu0 0.0
    %2046 = vmatpush1.msra.mxu0 0.0
    %2047 = vmatprep.subr.mxu0 0.0
    %2048 = vmatpush1.msra.mxu0 0.0
    %2049 = vmatprep.subr.mxu0 0.0
    %2050 = vmatpush1.msra.mxu0 0.0
    %2051 = vmatprep.subr.mxu0 0.0
    %2052 = vmatpush1.msra.mxu0 0.0
    %2053 = vmatprep.subr.mxu0 0.0
    %2054 = vmatpush1.msra.mxu0 0.0
    %2055 = vmatprep.subr.mxu0 0.0
    %2056 = vmatpush1.msra.mxu0 0.0
    %2057 = vmatprep.subr.mxu0 0.0
    %2058 = vmatpush1.msra.mxu0 0.0
    %2059 = vmatprep.subr.mxu0 0.0
    %2060 = vmatpush1.msra.mxu0 0.0
    %2061 = vmatprep.subr.mxu0 0.0
    %2062 = vmatpush1.msra.mxu0 0.0
    %2063 = vmatprep.subr.mxu0 0.0
    %2064 = vmatpush1.msra.mxu0 %v712
    %2065 = vmatprep.subr.mxu0 0.0
    %2066 = vmatpush1.msra.mxu0 %v711
    %2067 = vmatprep.subr.mxu0 0.0
    %2068 = vmatpush1.msra.mxu0 %v710
    %2069 = vmatprep.subr.mxu0 0.0
    %2070 = vmatpush1.msra.mxu0 %v709
    %2071 = vmatprep.subr.mxu0 0.0
    %2072 = vmatpush2.msra.mxu0 0.0
    %2073 = vmatprep.subr.mxu0 0.0
    %2074 = vmatpush2.msra.mxu0 0.0
    %2075 = vmatprep.subr.mxu0 0.0
    %2076 = vmatpush2.msra.mxu0 0.0
    %2077 = vmatprep.subr.mxu0 0.0
    %2078 = vmatpush2.msra.mxu0 0.0
    %2079 = vmatprep.subr.mxu0 0.0
    %2080 = vmatpush2.msra.mxu0 0.0
    %2081 = vmatprep.subr.mxu0 0.0
    %2082 = vmatpush2.msra.mxu0 0.0
    %2083 = vmatprep.subr.mxu0 0.0
    %2084 = vmatpush2.msra.mxu0 0.0
    %2085 = vmatprep.subr.mxu0 0.0
    %2086 = vmatpush2.msra.mxu0 0.0
    %2087 = vmatprep.subr.mxu0 0.0
    %2088 = vmatpush2.msra.mxu0 0.0
    %2089 = vmatprep.subr.mxu0 0.0
    %2090 = vmatpush2.msra.mxu0 0.0
    %2091 = vmatprep.subr.mxu0 0.0
    %2092 = vmatpush2.msra.mxu0 0.0
    %2093 = vmatprep.subr.mxu0 0.0
    %2094 = vmatpush2.msra.mxu0 0.0
    %2095 = vmatprep.subr.mxu0 0.0
    %2096 = vmatpush2.msra.mxu0 0.0
    %2097 = vmatprep.subr.mxu0 0.0
    %2098 = vmatpush2.msra.mxu0 0.0
    %2099 = vmatprep.subr.mxu0 0.0
    %2100 = vmatpush2.msra.mxu0 0.0
    %2101 = vmatprep.subr.mxu0 0.0
    %2102 = vmatpush2.msra.mxu0 0.0
    %2103 = vmatprep.mubr.f32.mxu0 0.0
    %2104 = vmatmul.mubr.f32.gmra.mxu0 %v2037
    %v2105 = vpop.f32.mrf.mxu0
    %v2106 = vadd.f32 0.0, %v2105
    %v2107 = vpop.f32.mrf.mxu0
    %2108 = vdwg.mxu0
    %v2110 = vsel %vm120, %v1597, 0
    %2112 = vmatprep.subr.mxu0 0.0
    %2113 = vmatpush1.msra.mxu0 0.0
    %2114 = vmatprep.subr.mxu0 0.0
    %2115 = vmatpush1.msra.mxu0 0.0
    %2116 = vmatprep.subr.mxu0 0.0
    %2117 = vmatpush1.msra.mxu0 0.0
    %2118 = vmatprep.subr.mxu0 0.0
    %2119 = vmatpush1.msra.mxu0 0.0
    %2120 = vmatprep.subr.mxu0 0.0
    %2121 = vmatpush1.msra.mxu0 0.0
    %2122 = vmatprep.subr.mxu0 0.0
    %2123 = vmatpush1.msra.mxu0 0.0
    %2124 = vmatprep.subr.mxu0 0.0
    %2125 = vmatpush1.msra.mxu0 0.0
    %2126 = vmatprep.subr.mxu0 0.0
    %2127 = vmatpush1.msra.mxu0 0.0
    %2128 = vmatprep.subr.mxu0 0.0
    %2129 = vmatpush1.msra.mxu0 0.0
    %2130 = vmatprep.subr.mxu0 0.0
    %2131 = vmatpush1.msra.mxu0 0.0
    %2132 = vmatprep.subr.mxu0 0.0
    %2133 = vmatpush1.msra.mxu0 0.0
    %2134 = vmatprep.subr.mxu0 0.0
    %2135 = vmatpush1.msra.mxu0 0.0
    %2136 = vmatprep.subr.mxu0 0.0
    %2137 = vmatpush1.msra.mxu0 %v716
    %2138 = vmatprep.subr.mxu0 0.0
    %2139 = vmatpush1.msra.mxu0 %v715
    %2140 = vmatprep.subr.mxu0 0.0
    %2141 = vmatpush1.msra.mxu0 %v714
    %2142 = vmatprep.subr.mxu0 0.0
    %2143 = vmatpush1.msra.mxu0 %v713
    %2144 = vmatprep.subr.mxu0 0.0
    %2145 = vmatpush2.msra.mxu0 0.0
    %2146 = vmatprep.subr.mxu0 0.0
    %2147 = vmatpush2.msra.mxu0 0.0
    %2148 = vmatprep.subr.mxu0 0.0
    %2149 = vmatpush2.msra.mxu0 0.0
    %2150 = vmatprep.subr.mxu0 0.0
    %2151 = vmatpush2.msra.mxu0 0.0
    %2152 = vmatprep.subr.mxu0 0.0
    %2153 = vmatpush2.msra.mxu0 0.0
    %2154 = vmatprep.subr.mxu0 0.0
    %2155 = vmatpush2.msra.mxu0 0.0
    %2156 = vmatprep.subr.mxu0 0.0
    %2157 = vmatpush2.msra.mxu0 0.0
    %2158 = vmatprep.subr.mxu0 0.0
    %2159 = vmatpush2.msra.mxu0 0.0
    %2160 = vmatprep.subr.mxu0 0.0
    %2161 = vmatpush2.msra.mxu0 0.0
    %2162 = vmatprep.subr.mxu0 0.0
    %2163 = vmatpush2.msra.mxu0 0.0
    %2164 = vmatprep.subr.mxu0 0.0
    %2165 = vmatpush2.msra.mxu0 0.0
    %2166 = vmatprep.subr.mxu0 0.0
    %2167 = vmatpush2.msra.mxu0 0.0
    %2168 = vmatprep.subr.mxu0 0.0
    %2169 = vmatpush2.msra.mxu0 0.0
    %2170 = vmatprep.subr.mxu0 0.0
    %2171 = vmatpush2.msra.mxu0 0.0
    %2172 = vmatprep.subr.mxu0 0.0
    %2173 = vmatpush2.msra.mxu0 0.0
    %2174 = vmatprep.subr.mxu0 0.0
    %2175 = vmatpush2.msra.mxu0 0.0
    %2176 = vmatprep.mubr.f32.mxu0 0.0
    %2177 = vmatmul.mubr.f32.gmra.mxu0 %v2110
    %v2178 = vpop.f32.mrf.mxu0
    %v2179 = vadd.f32 0.0, %v2178
    %v2180 = vpop.f32.mrf.mxu0
    %2181 = vdwg.mxu0
    %v2182 = vld [vmem:[#allocation10] sm:$0xff]
    %v2183 = vld [vmem:[#allocation10 + $0x8] sm:$0xff]
    %v2184 = vld [vmem:[#allocation10 + $0x10] sm:$0xff]
    %v2185 = vld [vmem:[#allocation10 + $0x18] sm:$0xff]
    %v2186 = vld [vmem:[%s8] sm:$0x1]
    %v2188 = vlaneseq
    %v2189 = vshrl.u32 %v2188, 7
    %v2190 = vsub.s32 0, %v2189
    %v2191 = vrot.slane %v2186, %v2190
    %v2194 = vsel %vm120, %v1668, 0
    %v2197 = vsel %vm120, %v1741, 0
    %v2200 = vsel %vm120, %v1814, 0
    %v2203 = vsel %vm120, %v1887, 0
    %v2206 = vsel %vm120, %v1960, 0
    %v2209 = vsel %vm120, %v2033, 0
    %v2212 = vsel %vm120, %v2106, 0
    %v2215 = vsel %vm120, %v2179, 0
    %2217 = vmatprep.subr.mxu0 0.0
    %2218 = vmatpush1.msra.mxu0 0.0
    %2219 = vmatprep.subr.mxu0 0.0
    %2220 = vmatpush1.msra.mxu0 0.0
    %2221 = vmatprep.subr.mxu0 0.0
    %2222 = vmatpush1.msra.mxu0 0.0
    %2223 = vmatprep.subr.mxu0 0.0
    %2224 = vmatpush1.msra.mxu0 0.0
    %2225 = vmatprep.subr.mxu0 0.0
    %2226 = vmatpush1.msra.mxu0 0.0
    %2227 = vmatprep.subr.mxu0 0.0
    %2228 = vmatpush1.msra.mxu0 0.0
    %2229 = vmatprep.subr.mxu0 0.0
    %2230 = vmatpush1.msra.mxu0 0.0
    %2231 = vmatprep.subr.mxu0 0.0
    %2232 = vmatpush1.msra.mxu0 0.0
    %2233 = vmatprep.subr.mxu0 0.0
    %2234 = vmatpush1.msra.mxu0 0.0
    %2235 = vmatprep.subr.mxu0 0.0
    %2236 = vmatpush1.msra.mxu0 0.0
    %2237 = vmatprep.subr.mxu0 0.0
    %2238 = vmatpush1.msra.mxu0 0.0
    %2239 = vmatprep.subr.mxu0 0.0
    %2240 = vmatpush1.msra.mxu0 0.0
    %2241 = vmatprep.subr.mxu0 0.0
    %2242 = vmatpush1.msra.mxu0 %v2185
    %2243 = vmatprep.subr.mxu0 0.0
    %2244 = vmatpush1.msra.mxu0 %v2184
    %2245 = vmatprep.subr.mxu0 0.0
    %2246 = vmatpush1.msra.mxu0 %v2183
    %2247 = vmatprep.subr.mxu0 0.0
    %2248 = vmatpush1.msra.mxu0 %v2182
    %2249 = vmatprep.subr.mxu0 0.0
    %2250 = vmatpush2.msra.mxu0 0.0
    %2251 = vmatprep.subr.mxu0 0.0
    %2252 = vmatpush2.msra.mxu0 0.0
    %2253 = vmatprep.subr.mxu0 0.0
    %2254 = vmatpush2.msra.mxu0 0.0
    %2255 = vmatprep.subr.mxu0 0.0
    %2256 = vmatpush2.msra.mxu0 0.0
    %2257 = vmatprep.subr.mxu0 0.0
    %2258 = vmatpush2.msra.mxu0 0.0
    %2259 = vmatprep.subr.mxu0 0.0
    %2260 = vmatpush2.msra.mxu0 0.0
    %2261 = vmatprep.subr.mxu0 0.0
    %2262 = vmatpush2.msra.mxu0 0.0
    %2263 = vmatprep.subr.mxu0 0.0
    %2264 = vmatpush2.msra.mxu0 0.0
    %2265 = vmatprep.subr.mxu0 0.0
    %2266 = vmatpush2.msra.mxu0 0.0
    %2267 = vmatprep.subr.mxu0 0.0
    %2268 = vmatpush2.msra.mxu0 0.0
    %2269 = vmatprep.subr.mxu0 0.0
    %2270 = vmatpush2.msra.mxu0 0.0
    %2271 = vmatprep.subr.mxu0 0.0
    %2272 = vmatpush2.msra.mxu0 0.0
    %2273 = vmatprep.subr.mxu0 0.0
    %2274 = vmatpush2.msra.mxu0 0.0
    %2275 = vmatprep.subr.mxu0 0.0
    %2276 = vmatpush2.msra.mxu0 0.0
    %2277 = vmatprep.subr.mxu0 0.0
    %2278 = vmatpush2.msra.mxu0 0.0
    %2279 = vmatprep.subr.mxu0 0.0
    %2280 = vmatpush2.msra.mxu0 0.0
    %2281 = vmatprep.mubr.f32.mxu0 0.0
    %2282 = vmatmul.mubr.f32.gmra.mxu0 %v2194
    %v2283 = vpop.f32.mrf.mxu0
    %v2284 = vadd.f32 %v2191, %v2283
    %v2285 = vpop.f32.mrf.mxu0
    %2286 = vmatprep.mubr.f32.mxu0 0.0
    %2287 = vmatmul.mubr.f32.gmra.mxu0 %v2197
    %v2288 = vpop.f32.mrf.mxu0
    %v2289 = vadd.f32 %v2191, %v2288
    %v2290 = vpop.f32.mrf.mxu0
    %2291 = vmatprep.mubr.f32.mxu0 0.0
    %2292 = vmatmul.mubr.f32.gmra.mxu0 %v2200
    %v2293 = vpop.f32.mrf.mxu0
    %v2294 = vadd.f32 %v2191, %v2293
    %v2295 = vpop.f32.mrf.mxu0
    %2296 = vmatprep.mubr.f32.mxu0 0.0
    %2297 = vmatmul.mubr.f32.gmra.mxu0 %v2203
    %v2298 = vpop.f32.mrf.mxu0
    %v2299 = vadd.f32 %v2191, %v2298
    %v2300 = vpop.f32.mrf.mxu0
    %2301 = vmatprep.mubr.f32.mxu0 0.0
    %2302 = vmatmul.mubr.f32.gmra.mxu0 %v2206
    %v2303 = vpop.f32.mrf.mxu0
    %v2304 = vadd.f32 %v2191, %v2303
    %v2305 = vpop.f32.mrf.mxu0
    %2306 = vmatprep.mubr.f32.mxu0 0.0
    %2307 = vmatmul.mubr.f32.gmra.mxu0 %v2209
    %v2308 = vpop.f32.mrf.mxu0
    %v2309 = vadd.f32 %v2191, %v2308
    %v2310 = vpop.f32.mrf.mxu0
    %2311 = vmatprep.mubr.f32.mxu0 0.0
    %2312 = vmatmul.mubr.f32.gmra.mxu0 %v2212
    %v2313 = vpop.f32.mrf.mxu0
    %v2314 = vadd.f32 %v2191, %v2313
    %v2315 = vpop.f32.mrf.mxu0
    %2316 = vmatprep.mubr.f32.mxu0 0.0
    %2317 = vmatmul.mubr.f32.gmra.mxu0 %v2215
    %v2318 = vpop.f32.mrf.mxu0
    %v2319 = vadd.f32 %v2191, %v2318
    %v2320 = vpop.f32.mrf.mxu0
    %2321 = vdwg.mxu0
    %v2322 = vmul.f32 %v2284, %v2284
    %v2323 = vmul.f32 %v2289, %v2289
    %v2324 = vmul.f32 %v2294, %v2294
    %v2325 = vmul.f32 %v2299, %v2299
    %v2326 = vmul.f32 %v2304, %v2304
    %v2327 = vmul.f32 %v2309, %v2309
    %v2328 = vmul.f32 %v2314, %v2314
    %v2329 = vmul.f32 %v2319, %v2319
    %v2330 = vsel %vm120, %v2322, 0.0
    %2331 = vadd.xlane.f32.xlu0 %v2330
    %v2332 = vpop.xlane.xlu0 %2331
    %v2333 = vsel %vm120, %v2323, 0.0
    %2334 = vadd.xlane.f32.xlu0 %v2333
    %v2335 = vpop.xlane.xlu0 %2334
    %v2336 = vsel %vm120, %v2324, 0.0
    %2337 = vadd.xlane.f32.xlu0 %v2336
    %v2338 = vpop.xlane.xlu0 %2337
    %v2339 = vsel %vm120, %v2325, 0.0
    %2340 = vadd.xlane.f32.xlu0 %v2339
    %v2341 = vpop.xlane.xlu0 %2340
    %v2342 = vsel %vm120, %v2326, 0.0
    %2343 = vadd.xlane.f32.xlu0 %v2342
    %v2344 = vpop.xlane.xlu0 %2343
    %v2345 = vsel %vm120, %v2327, 0.0
    %2346 = vadd.xlane.f32.xlu0 %v2345
    %v2347 = vpop.xlane.xlu0 %2346
    %v2348 = vsel %vm120, %v2328, 0.0
    %2349 = vadd.xlane.f32.xlu0 %v2348
    %v2350 = vpop.xlane.xlu0 %2349
    %v2351 = vsel %vm120, %v2329, 0.0
    %2352 = vadd.xlane.f32.xlu0 %v2351
    %v2353 = vpop.xlane.xlu0 %2352
    %v2354 = vrsqrt.pop %v2332
    %v2355 = vmul.f32 %v2332, %v2354
    %vm2356 = vcmp.eq.f32.partialorder %v2332, inf
    %v2357 = vsel %vm2356, %v2332, %v2355
    %vm2358 = vcmp.eq.f32.partialorder %v2332, 0.0
    %v2359 = vand.u32 %v2332, 2147483648
    %v2360 = vsel %vm2358, %v2359, %v2357
    %v2361 = vrsqrt.pop %v2335
    %v2362 = vmul.f32 %v2335, %v2361
    %vm2363 = vcmp.eq.f32.partialorder %v2335, inf
    %v2364 = vsel %vm2363, %v2335, %v2362
    %vm2365 = vcmp.eq.f32.partialorder %v2335, 0.0
    %v2366 = vand.u32 %v2335, 2147483648
    %v2367 = vsel %vm2365, %v2366, %v2364
    %v2368 = vrsqrt.pop %v2338
    %v2369 = vmul.f32 %v2338, %v2368
    %vm2370 = vcmp.eq.f32.partialorder %v2338, inf
    %v2371 = vsel %vm2370, %v2338, %v2369
    %vm2372 = vcmp.eq.f32.partialorder %v2338, 0.0
    %v2373 = vand.u32 %v2338, 2147483648
    %v2374 = vsel %vm2372, %v2373, %v2371
    %v2375 = vrsqrt.pop %v2341
    %v2376 = vmul.f32 %v2341, %v2375
    %vm2377 = vcmp.eq.f32.partialorder %v2341, inf
    %v2378 = vsel %vm2377, %v2341, %v2376
    %vm2379 = vcmp.eq.f32.partialorder %v2341, 0.0
    %v2380 = vand.u32 %v2341, 2147483648
    %v2381 = vsel %vm2379, %v2380, %v2378
    %v2382 = vrsqrt.pop %v2344
    %v2383 = vmul.f32 %v2344, %v2382
    %vm2384 = vcmp.eq.f32.partialorder %v2344, inf
    %v2385 = vsel %vm2384, %v2344, %v2383
    %vm2386 = vcmp.eq.f32.partialorder %v2344, 0.0
    %v2387 = vand.u32 %v2344, 2147483648
    %v2388 = vsel %vm2386, %v2387, %v2385
    %v2389 = vrsqrt.pop %v2347
    %v2390 = vmul.f32 %v2347, %v2389
    %vm2391 = vcmp.eq.f32.partialorder %v2347, inf
    %v2392 = vsel %vm2391, %v2347, %v2390
    %vm2393 = vcmp.eq.f32.partialorder %v2347, 0.0
    %v2394 = vand.u32 %v2347, 2147483648
    %v2395 = vsel %vm2393, %v2394, %v2392
    %v2396 = vrsqrt.pop %v2350
    %v2397 = vmul.f32 %v2350, %v2396
    %vm2398 = vcmp.eq.f32.partialorder %v2350, inf
    %v2399 = vsel %vm2398, %v2350, %v2397
    %vm2400 = vcmp.eq.f32.partialorder %v2350, 0.0
    %v2401 = vand.u32 %v2350, 2147483648
    %v2402 = vsel %vm2400, %v2401, %v2399
    %v2403 = vrsqrt.pop %v2353
    %v2404 = vmul.f32 %v2353, %v2403
    %vm2405 = vcmp.eq.f32.partialorder %v2353, inf
    %v2406 = vsel %vm2405, %v2353, %v2404
    %vm2407 = vcmp.eq.f32.partialorder %v2353, 0.0
    %v2408 = vand.u32 %v2353, 2147483648
    %v2409 = vsel %vm2407, %v2408, %v2406
    %v2410 = vmax.f32 %v2360, 1e-08
    %v2411 = vmax.f32 %v2367, 1e-08
    %v2412 = vmax.f32 %v2374, 1e-08
    %v2413 = vmax.f32 %v2381, 1e-08
    %v2414 = vmax.f32 %v2388, 1e-08
    %v2415 = vmax.f32 %v2395, 1e-08
    %v2416 = vmax.f32 %v2402, 1e-08
    %v2417 = vmax.f32 %v2409, 1e-08
    %v2418 = vrcp.pop %v2410
    %v2419 = vrcp.pop %v2411
    %v2420 = vrcp.pop %v2412
    %v2421 = vrcp.pop %v2413
    %v2422 = vrcp.pop %v2414
    %v2423 = vrcp.pop %v2415
    %v2424 = vrcp.pop %v2416
    %v2425 = vrcp.pop %v2417
    %v2426 = vmul.f32 %v2284, %v2418
    %v2427 = vmul.f32 %v2289, %v2419
    %v2428 = vmul.f32 %v2294, %v2420
    %v2429 = vmul.f32 %v2299, %v2421
    %v2430 = vmul.f32 %v2304, %v2422
    %v2431 = vmul.f32 %v2309, %v2423
    %v2432 = vmul.f32 %v2314, %v2424
    %v2433 = vmul.f32 %v2319, %v2425
    %v2434 = vsel %vm120, %v2426, 0.0
    %v2435 = vrot.slane %v2434, 4
    %v2436 = vadd.f32 %v2434, %v2435
    %v2437 = vrot.slane %v2436, 2
    %v2438 = vadd.f32 %v2436, %v2437
    %v2439 = vrot.slane %v2438, 1
    %v2440 = vadd.f32 %v2438, %v2439
    %v2441 = vsel %vm120, %v2427, 0.0
    %v2442 = vrot.slane %v2441, 4
    %v2443 = vadd.f32 %v2441, %v2442
    %v2444 = vrot.slane %v2443, 2
    %v2445 = vadd.f32 %v2443, %v2444
    %v2446 = vrot.slane %v2445, 1
    %v2447 = vadd.f32 %v2445, %v2446
    %v2448 = vsel %vm120, %v2428, 0.0
    %v2449 = vrot.slane %v2448, 4
    %v2450 = vadd.f32 %v2448, %v2449
    %v2451 = vrot.slane %v2450, 2
    %v2452 = vadd.f32 %v2450, %v2451
    %v2453 = vrot.slane %v2452, 1
    %v2454 = vadd.f32 %v2452, %v2453
    %v2455 = vsel %vm120, %v2429, 0.0
    %v2456 = vrot.slane %v2455, 4
    %v2457 = vadd.f32 %v2455, %v2456
    %v2458 = vrot.slane %v2457, 2
    %v2459 = vadd.f32 %v2457, %v2458
    %v2460 = vrot.slane %v2459, 1
    %v2461 = vadd.f32 %v2459, %v2460
    %v2462 = vsel %vm120, %v2430, 0.0
    %v2463 = vrot.slane %v2462, 4
    %v2464 = vadd.f32 %v2462, %v2463
    %v2465 = vrot.slane %v2464, 2
    %v2466 = vadd.f32 %v2464, %v2465
    %v2467 = vrot.slane %v2466, 1
    %v2468 = vadd.f32 %v2466, %v2467
    %v2469 = vsel %vm120, %v2431, 0.0
    %v2470 = vrot.slane %v2469, 4
    %v2471 = vadd.f32 %v2469, %v2470
    %v2472 = vrot.slane %v2471, 2
    %v2473 = vadd.f32 %v2471, %v2472
    %v2474 = vrot.slane %v2473, 1
    %v2475 = vadd.f32 %v2473, %v2474
    %v2476 = vsel %vm120, %v2432, 0.0
    %v2477 = vrot.slane %v2476, 4
    %v2478 = vadd.f32 %v2476, %v2477
    %v2479 = vrot.slane %v2478, 2
    %v2480 = vadd.f32 %v2478, %v2479
    %v2481 = vrot.slane %v2480, 1
    %v2482 = vadd.f32 %v2480, %v2481
    %v2483 = vsel %vm120, %v2433, 0.0
    %v2484 = vrot.slane %v2483, 4
    %v2485 = vadd.f32 %v2483, %v2484
    %v2486 = vrot.slane %v2485, 2
    %v2487 = vadd.f32 %v2485, %v2486
    %v2488 = vrot.slane %v2487, 1
    %v2489 = vadd.f32 %v2487, %v2488
    %v2490 = vrcp.pop 8.0
    %v2491 = vmul.f32 %v2440, %v2490
    %v2492 = vmul.f32 %v2447, %v2490
    %v2493 = vmul.f32 %v2454, %v2490
    %v2494 = vmul.f32 %v2461, %v2490
    %v2495 = vmul.f32 %v2468, %v2490
    %v2496 = vmul.f32 %v2475, %v2490
    %v2497 = vmul.f32 %v2482, %v2490
    %v2498 = vmul.f32 %v2489, %v2490
    %v2499 = vmul.f32 %v2426, %v2491
    %v2500 = vmul.f32 %v2427, %v2492
    %v2501 = vmul.f32 %v2428, %v2493
    %v2502 = vmul.f32 %v2429, %v2494
    %v2503 = vmul.f32 %v2430, %v2495
    %v2504 = vmul.f32 %v2431, %v2496
    %v2505 = vmul.f32 %v2432, %v2497
    %v2506 = vmul.f32 %v2433, %v2498
    %v2508 = vsel %vm120, 1.0, 0
    %v2511 = vsel %vm120, %v2499, 0
    %v2514 = vsel %vm120, %v2500, 0
    %v2517 = vsel %vm120, %v2501, 0
    %v2520 = vsel %vm120, %v2502, 0
    %v2523 = vsel %vm120, %v2503, 0
    %v2526 = vsel %vm120, %v2504, 0
    %v2529 = vsel %vm120, %v2505, 0
    %v2532 = vsel %vm120, %v2506, 0
    %2534 = vmatprep.subr.mxu0 0.0
    %2535 = vmatpush1.xpose.msra.mxu0 0.0
    %2536 = vmatprep.subr.mxu0 0.0
    %2537 = vmatpush1.xpose.msra.mxu0 0.0
    %2538 = vmatprep.subr.mxu0 0.0
    %2539 = vmatpush1.xpose.msra.mxu0 0.0
    %2540 = vmatprep.subr.mxu0 0.0
    %2541 = vmatpush1.xpose.msra.mxu0 0.0
    %2542 = vmatprep.subr.mxu0 0.0
    %2543 = vmatpush1.xpose.msra.mxu0 0.0
    %2544 = vmatprep.subr.mxu0 0.0
    %2545 = vmatpush1.xpose.msra.mxu0 0.0
    %2546 = vmatprep.subr.mxu0 0.0
    %2547 = vmatpush1.xpose.msra.mxu0 0.0
    %2548 = vmatprep.subr.mxu0 0.0
    %2549 = vmatpush1.xpose.msra.mxu0 0.0
    %2550 = vmatprep.subr.mxu0 0.0
    %2551 = vmatpush1.xpose.msra.mxu0 %v2532
    %2552 = vmatprep.subr.mxu0 0.0
    %2553 = vmatpush1.xpose.msra.mxu0 %v2529
    %2554 = vmatprep.subr.mxu0 0.0
    %2555 = vmatpush1.xpose.msra.mxu0 %v2526
    %2556 = vmatprep.subr.mxu0 0.0
    %2557 = vmatpush1.xpose.msra.mxu0 %v2523
    %2558 = vmatprep.subr.mxu0 0.0
    %2559 = vmatpush1.xpose.msra.mxu0 %v2520
    %2560 = vmatprep.subr.mxu0 0.0
    %2561 = vmatpush1.xpose.msra.mxu0 %v2517
    %2562 = vmatprep.subr.mxu0 0.0
    %2563 = vmatpush1.xpose.msra.mxu0 %v2514
    %2564 = vmatprep.subr.mxu0 0.0
    %2565 = vmatpush1.xpose.msra.mxu0 %v2511
    %2566 = vmatprep.subr.mxu0 0.0
    %2567 = vmatpush2.xpose.msra.mxu0 0.0
    %2568 = vmatprep.subr.mxu0 0.0
    %2569 = vmatpush2.xpose.msra.mxu0 0.0
    %2570 = vmatprep.subr.mxu0 0.0
    %2571 = vmatpush2.xpose.msra.mxu0 0.0
    %2572 = vmatprep.subr.mxu0 0.0
    %2573 = vmatpush2.xpose.msra.mxu0 0.0
    %2574 = vmatprep.subr.mxu0 0.0
    %2575 = vmatpush2.xpose.msra.mxu0 0.0
    %2576 = vmatprep.subr.mxu0 0.0
    %2577 = vmatpush2.xpose.msra.mxu0 0.0
    %2578 = vmatprep.subr.mxu0 0.0
    %2579 = vmatpush2.xpose.msra.mxu0 0.0
    %2580 = vmatprep.subr.mxu0 0.0
    %2581 = vmatpush2.xpose.msra.mxu0 0.0
    %2582 = vmatprep.subr.mxu0 0.0
    %2583 = vmatpush2.xpose.msra.mxu0 0.0
    %2584 = vmatprep.subr.mxu0 0.0
    %2585 = vmatpush2.xpose.msra.mxu0 0.0
    %2586 = vmatprep.subr.mxu0 0.0
    %2587 = vmatpush2.xpose.msra.mxu0 0.0
    %2588 = vmatprep.subr.mxu0 0.0
    %2589 = vmatpush2.xpose.msra.mxu0 0.0
    %2590 = vmatprep.subr.mxu0 0.0
    %2591 = vmatpush2.xpose.msra.mxu0 0.0
    %2592 = vmatprep.subr.mxu0 0.0
    %2593 = vmatpush2.xpose.msra.mxu0 0.0
    %2594 = vmatprep.subr.mxu0 0.0
    %2595 = vmatpush2.xpose.msra.mxu0 0.0
    %2596 = vmatprep.subr.mxu0 0.0
    %2597 = vmatpush2.xpose.msra.mxu0 0.0
    %2598 = vmatprep.mubr.f32.mxu0 0.0
    %2599 = vmatmul.mubr.f32.gmra.mxu0 %v2508
    %v2600 = vpop.f32.mrf.mxu0
    %v2601 = vadd.f32 0.0, %v2600
    %v2602 = vpop.f32.mrf.mxu0
    %2603 = vdwg.mxu0
    %vm2604 = vcmask 516096
    %2605 = vst.msk [vmem:[#allocation11] sm:$0x1] %vm2604, %v2601
    // Predicated region
    $region58: #{tpu_custom_call.1} parent=1 // pred_check
      _
    $region59: #{tpu_custom_call.1} parent=1 // pred_check_branch
      %2607 = sbr.rel (0) target = $region61
    $region60: #{tpu_custom_call.1} parent=1 // pred_region
      %s2609 = ssub.s32 16, 16
      %2610 = vsyncadd [#allocation4], %s2609
      %s2612 = sshll.u32 [#allocation11], 4
      %s2613 = int_to_ptr.vmem [resolvable:$true] %s2612
      %2615 = dma.vmem_to_hbm [thread:$0]  %s2613, 16, %s9, [#allocation4]
    $region61: #{tpu_custom_call.1} parent=1 // pred_fallthru
      _
    // Predicated region
    $region62: #{tpu_custom_call.1} parent=1 // pred_check
      _
    $region63: #{tpu_custom_call.1} parent=1 // pred_check_branch
      %2617 = sbr.rel (0) target = $region65
    $region64: #{tpu_custom_call.1} parent=1 // pred_region
      %2618 = dma.done [#allocation4], 16
    $region65: #{tpu_custom_call.1} parent=1 // pred_fallthru
      _
    %2619 = vsyncpa [#allocation3], 1
    %2620 = vsyncpa [#allocation6], 1
    %2621 = vsyncpa [#allocation9], 1
    %2622 = vsyncpa [#allocation4], 1

</llo_original>
